<compile_context>
chip_gen: v7x
topology: tpu7x:2x2x1
jax: 0.10.0
libtpu: 0.0.40
codegen_flags: <defaults>
</compile_context>

<pallas_src>
import numpy as np
import jax
import jax.numpy as jnp
from jax import lax
from jax.experimental import pallas as pl
from jax.experimental.pallas import tpu as pltpu


# ---------------------------------------------------------------------------
# elementwise loss helpers (used inside the kernel)
# ---------------------------------------------------------------------------
def _bce_elem(p, y):
    # matches torch.nn.BCELoss element term (log clamped at -100)
    # TODO(synk): log1p(-p) would be preferable for p->1 precision; plain log is
    # used because it is guaranteed to lower on Mosaic.
    logp = jnp.maximum(jnp.log(p), -100.0)
    log1mp = jnp.maximum(jnp.log(1.0 - p), -100.0)
    return -(y * logp + (1.0 - y) * log1mp)


def _smooth_l1_elem(d):
    # matches torch.nn.SmoothL1Loss with beta=1.0 (element term)
    ad = jnp.abs(d)
    return jnp.where(ad < 1.0, 0.5 * d * d, ad - 0.5)


# ---------------------------------------------------------------------------
# Fused criterion kernel (spatial + temporal, regression decoder)
# ---------------------------------------------------------------------------
def make_criterion_kernel(N, H, W, b, T, delta=0.05):
    HW = H * W
    inv_hm = 1.0 / float(N * HW)          # BCELoss mean over N*1*H*W
    inv_wh = 1.0 / float(N * HW * 2)      # SmoothL1 mean over N*2*H*W
    inv_map = 1.0 / float(N * HW)         # sum over M of per-map means
    inv_score = 1.0 / float(b * T)        # BCELoss mean over b*T
    inv_reg = 1.0 / float(b * T * 2)      # SmoothL1 mean over b*T*2
    inv_2sig2 = 1.0 / (2.0 * delta * delta)
    inv_T = 1.0 / float(T)
    fW, fH = float(W), float(H)

    def kernel(boxcols_ref, intercols_ref, xrow_ref, yrow_ref,
               hm_ref, wh_ref, raw_ref, kron_ref,
               reg_ref, score_ref, iou_ref,
               gauss_ref, loss_ref,
               logp_acc, log1mp_acc):
        m = pl.program_id(0)

        # ---------------- per-scale map: resize (MXU) + log accumulation ----
        @pl.when(m == 0)
        def _init():
            logp_acc[...] = jnp.zeros_like(logp_acc)
            log1mp_acc[...] = jnp.zeros_like(log1mp_acc)

        # bilinear(align_corners=True) resize == raw_flat @ interp matrix
        resized = jnp.dot(raw_ref[...], kron_ref[...],
                          preferred_element_type=jnp.float32)        # (N, HW)
        logp_acc[...] += jnp.maximum(jnp.log(resized), -100.0)
        log1mp_acc[...] += jnp.maximum(jnp.log(1.0 - resized), -100.0)

        # ---------------- finalize (last grid step) --------------------------
        @pl.when(m == pl.num_programs(0) - 1)
        def _finalize():
            # --- spatial gaussian target ---
            # TODO(synk): generate_2d_gaussian reference impl not provided;
            # fixed-sigma (delta) gaussian at the box center.
            cx = boxcols_ref[0]                      # (N, 1)
            cy = boxcols_ref[1]
            ww = boxcols_ref[2] * fW                 # target widths  (N, 1)
            hh = boxcols_ref[3] * fH                 # target heights (N, 1)
            xn = xrow_ref[...]                       # (1, HW)
            yn = yrow_ref[...]
            g = jnp.exp(-((xn - cx) ** 2 + (yn - cy) ** 2) * inv_2sig2)  # (N, HW)
            gauss_ref[...] = g

            # heatmap BCE (one reduce)
            hm_sum = jnp.sum(_bce_elem(hm_ref[...], g))

            # wh SmoothL1, gaussian factored out: smooth_l1((pred - gt) * g)
            dw = (wh_ref[0] - ww) * g
            dh = (wh_ref[1] - hh) * g
            wh_sum = jnp.sum(_smooth_l1_elem(dw) + _smooth_l1_elem(dh))

            # per-scale map BCE from accumulated logs (one combine + one reduce)
            map_sum = -jnp.sum(g * logp_acc[...] + (1.0 - g) * log1mp_acc[...])

            # --- temporal ---
            t_idx = lax.broadcasted_iota(jnp.int32, (b, T), 1).astype(jnp.float32)
            start = intercols_ref[0]                 # (b, 1)
            end = intercols_ref[1]
            action = jnp.logical_and(t_idx >= start, t_idx <= end).astype(jnp.float32)
            reg0 = reg_ref[0]                        # (b, T)
            reg1 = reg_ref[1]

            # TODO(synk): compute_temporal_reg_tar reference impl not provided;
            # standard start/end offset targets masked by action_gt.
            lbl0 = (t_idx - start) * action
            lbl1 = (end - t_idx) * action
            reg_sum = jnp.sum(_smooth_l1_elem(reg0 * action - lbl0) +
                              _smooth_l1_elem(reg1 * action - lbl1))

            # score BCE against action_gt
            score_sum = jnp.sum(_bce_elem(score_ref[...], action))

            # segment tIoU between per-step predicted segments and the GT segment
            # TODO(synk): segment_tiou reference impl not provided; standard IoU.
            ps = jnp.clip((t_idx - reg0) * inv_T, 0.0, 1.0)
            pe = jnp.clip((t_idx + reg1) * inv_T, 0.0, 1.0)
            gs = start * inv_T
            ge = end * inv_T
            ilen = jnp.maximum(jnp.minimum(pe, ge) - jnp.maximum(ps, gs), 0.0)
            union = (pe - ps) + (ge - gs) - ilen
            iou_t = ilen / jnp.maximum(union, 1e-6)
            pos = (iou_t > 0.5).astype(jnp.float32)
            iou_sum = jnp.sum(_bce_elem(iou_ref[...], iou_t) * pos)
            cnt = jnp.sum(pos)

            # --- all means finished in-kernel ---
            loss_ref[0, 0] = hm_sum * inv_hm
            loss_ref[0, 1] = wh_sum * inv_wh
            loss_ref[0, 2] = map_sum * inv_map
            loss_ref[0, 3] = score_sum * inv_score
            loss_ref[0, 4] = reg_sum * inv_reg
            loss_ref[0, 5] = jnp.where(cnt > 0.0,
                                       iou_sum / jnp.maximum(cnt, 1.0), 0.0)

    return kernel


def criterion_losses(padded_box_gt, inter, pred_hm, pred_wh,
                     raw_maps, kron_stack,
                     temporal_reg, temporal_score, temporal_iou):
    N, _, H, W = pred_hm.shape
    HW = H * W
    M, _, Kmax = raw_maps.shape
    b, T = temporal_score.shape

    hm_flat = pred_hm.reshape(N, HW).astype(jnp.float32)
    # channel-major so the kernel only does first-dim indexing
    # TODO(synk): for very large wh tensors, pass (N,2,HW) and slice in-kernel
    # to drop this wrapper transpose.
    wh_cm = jnp.transpose(pred_wh, (1, 0, 2, 3)).reshape(2, N, HW).astype(jnp.float32)
    reg_cm = jnp.transpose(temporal_reg, (2, 0, 1)).astype(jnp.float32)   # (2, b, T)

    # tiny (N,1)/(b,1) columns for in-kernel lane-broadcast (no scalar splats)
    boxcols = jnp.transpose(padded_box_gt.astype(jnp.float32))[:, :, None]   # (4, N, 1)
    intercols = jnp.transpose(inter.astype(jnp.float32))[:, :, None]         # (2, b, 1)

    # compile-time normalized pixel-center coordinates, one (1,HW) row each
    ys, xs = np.meshgrid(np.arange(H, dtype=np.float32),
                         np.arange(W, dtype=np.float32), indexing='ij')
    xrow = jnp.asarray(((xs + 0.5) / W).reshape(1, HW), dtype=jnp.float32)
    yrow = jnp.asarray(((ys + 0.5) / H).reshape(1, HW), dtype=jnp.float32)

    score = temporal_score.astype(jnp.float32)
    iou = temporal_iou.astype(jnp.float32)

    # VMEM budget (double-buffered map/kron blocks + resident tensors + headroom)
    per_step_elems = (hm_flat.size + wh_cm.size + reg_cm.size + score.size + iou.size
                      + boxcols.size + intercols.size + xrow.size + yrow.size
                      + N * Kmax + Kmax * HW            # one raw-map block + one kron block
                      + 3 * N * HW + 8)                 # gauss out + 2 log accumulators
    vmem_limit = int(min(max(4 * 4 * per_step_elems, 16 * 2 ** 20), 48 * 2 ** 20))

    cost = pl.CostEstimate(
        flops=int(2 * M * N * Kmax * HW + 40 * (M + 4) * N * HW + 80 * b * T),
        transcendentals=int((2 * M + 3) * N * HW + 4 * b * T),
        bytes_accessed=int(4 * (boxcols.size + intercols.size + xrow.size + yrow.size
                                + hm_flat.size + wh_cm.size + raw_maps.size
                                + kron_stack.size + reg_cm.size + score.size + iou.size
                                + N * HW + 6)))

    grid_spec = pltpu.PrefetchScalarGridSpec(
        num_scalar_prefetch=0,
        grid=(M,),
        in_specs=[
            pl.BlockSpec((4, N, 1), lambda m: (0, 0, 0)),       # box columns
            pl.BlockSpec((2, b, 1), lambda m: (0, 0, 0)),       # interval columns
            pl.BlockSpec((1, HW), lambda m: (0, 0)),            # x coords
            pl.BlockSpec((1, HW), lambda m: (0, 0)),            # y coords
            pl.BlockSpec((N, HW), lambda m: (0, 0)),            # pred heatmap
            pl.BlockSpec((2, N, HW), lambda m: (0, 0, 0)),      # pred wh (channel-major)
            pl.BlockSpec((None, N, Kmax), lambda m: (m, 0, 0)), # raw map m
            pl.BlockSpec((None, Kmax, HW), lambda m: (m, 0, 0)),# interp matrix m
            pl.BlockSpec((2, b, T), lambda m: (0, 0, 0)),       # temporal reg
            pl.BlockSpec((b, T), lambda m: (0, 0)),             # temporal score
            pl.BlockSpec((b, T), lambda m: (0, 0)),             # temporal iou
        ],
        out_specs=(
            pl.BlockSpec((N, HW), lambda m: (0, 0)),            # gaussian gt
            pl.BlockSpec((1, 6), lambda m: (0, 0),
                         memory_space=pltpu.MemorySpace.SMEM),  # packed losses
        ),
        scratch_shapes=[pltpu.VMEM((N, HW), jnp.float32),       # sum log(map)
                        pltpu.VMEM((N, HW), jnp.float32)],      # sum log(1-map)
    )

    gauss, losses = pl.pallas_call(
        make_criterion_kernel(N, H, W, b, T),
        out_shape=(jax.ShapeDtypeStruct((N, HW), jnp.float32),
                   jax.ShapeDtypeStruct((1, 6), jnp.float32)),
        grid_spec=grid_spec,
        compiler_params=pltpu.CompilerParams(
            dimension_semantics=("arbitrary",),     # M is a reduction axis
            vmem_limit_bytes=vmem_limit),
        cost_estimate=cost,
    )(boxcols, intercols, xrow, yrow, hm_flat, wh_cm, raw_maps, kron_stack,
      reg_cm, score, iou)

    loss_dict = {
        'spatial_hm_loss': losses[0, 0],
        'spatial_wh_loss': losses[0, 1],
        'spatial_map_loss': losses[0, 2],
        'temporal_score_loss': losses[0, 3],
        'temporal_reg_loss': losses[0, 4],
        'temporal_iou_loss': losses[0, 5],
    }
    gaussian_gt = gauss.reshape(N, 1, H, W)
    return loss_dict, gaussian_gt


# ---------------------------------------------------------------------------
# Compile-time bilinear (align_corners=True) interpolation matrices
# ---------------------------------------------------------------------------
def _interp_matrix_np(src, dst):
    if dst == 1:
        pos = np.zeros((1,), np.float64)
    else:
        pos = np.linspace(0.0, float(src - 1), dst)
    i0 = np.clip(np.floor(pos).astype(np.int64), 0, src - 1)
    i1 = np.minimum(i0 + 1, src - 1)
    frac = (pos - i0).astype(np.float32)
    w = np.zeros((dst, src), np.float32)
    w[np.arange(dst), i0] += (1.0 - frac)
    w[np.arange(dst), i1] += frac
    return w


def _kron_resize_matrix_np(hs, ws, H, W):
    # resized_flat (N, H*W) = raw_flat (N, hs*ws) @ K, K[(h,w),(p,q)] = wy[p,h]*wx[q,w]
    wy = _interp_matrix_np(hs, H)   # (H, hs)
    wx = _interp_matrix_np(ws, W)   # (W, ws)
    k = np.einsum('ph,qw->hwpq', wy, wx).reshape(hs * ws, H * W)
    return k.astype(np.float32)


# ---------------------------------------------------------------------------
# SetCriterion.forward equivalent
# ---------------------------------------------------------------------------
class Cfg:
    temporal_decoder_type = 'regression'


def set_criterion_forward(cfg, outputs, durations, inter_idx, targets):
    if cfg.temporal_decoder_type != 'regression':
        # TODO(synk): 'anchor' decoder branch (generate_proposals /
        # generate_anchor_scores helpers) not implemented.
        raise NotImplementedError

    h, w = outputs['spatial_map'].shape[-2:]
    HW = h * w

    # ---- spatial target preparation (tiny glue) ----
    box_gt = jnp.concatenate([t['boxes'] for t in targets], axis=0)        # (N, 4)
    size_gt = jnp.stack([t['size'] for t in targets])                      # (B, 2) [h, w]
    padded_size = jnp.max(size_gt, axis=0)
    scale = jnp.stack([size_gt[:, 1], size_gt[:, 0],
                       size_gt[:, 1], size_gt[:, 0]], axis=-1)
    padded_scale = jnp.stack([padded_size[1], padded_size[0],
                              padded_size[1], padded_size[0]])[None]
    padded_box_gt = box_gt * scale / padded_scale

    # ---- pack raw (pre-resize) maps + compile-time interpolation matrices ----
    kdims = [int(m.shape[-2]) * int(m.shape[-1]) for m in outputs['maps']]
    Kmax = max(128, ((max(kdims) + 127) // 128) * 128)
    raw_list, kron_list = [], []
    for m_arr in outputs['maps']:
        n_, _, hs, ws = m_arr.shape
        raw = m_arr.reshape(n_, hs * ws).astype(jnp.float32)
        raw = jnp.pad(raw, ((0, 0), (0, Kmax - hs * ws)))
        raw_list.append(raw)
        kmat = np.zeros((Kmax, HW), np.float32)
        kmat[:hs * ws] = _kron_resize_matrix_np(hs, ws, h, w)
        kron_list.append(kmat)
    raw_maps = jnp.stack(raw_list, axis=0)                   # (M, N, Kmax)
    kron_stack = jnp.asarray(np.stack(kron_list, axis=0))    # (M, Kmax, HW)

    inter = jnp.asarray(inter_idx, dtype=jnp.float32)        # (b, 2)

    return criterion_losses(
        padded_box_gt, inter, outputs['spatial_map'], outputs['spatial_wh'],
        raw_maps, kron_stack,
        outputs['temporal_reg'], outputs['temporal_score'], outputs['temporal_iou'])


# ---------------------------------------------------------------------------
# Example run
# ---------------------------------------------------------------------------
if __name__ == "__main__":
    key = jax.random.PRNGKey(0)
    ks = jax.random.split(key, 10)
    B, H, W, T = 2, 16, 16, 8

    outputs = {
        'spatial_map': jax.nn.sigmoid(jax.random.normal(ks[0], (B, 1, H, W), jnp.float32)),
        'spatial_wh': jnp.abs(jax.random.normal(ks[1], (B, 2, H, W), jnp.float32)) * 3.0,
        'maps': [
            jax.nn.sigmoid(jax.random.normal(ks[2], (B, 1, 8, 8), jnp.float32)),
            jax.nn.sigmoid(jax.random.normal(ks[3], (B, 1, H, W), jnp.float32)),
        ],
        'temporal_reg': jnp.abs(jax.random.normal(ks[4], (B, T, 2), jnp.float32)) * 2.0,
        'temporal_score': jax.nn.sigmoid(jax.random.normal(ks[5], (B, T), jnp.float32)),
        'temporal_iou': jax.nn.sigmoid(jax.random.normal(ks[6], (B, T), jnp.float32)),
    }
    durations = [8, 6]
    inter_idx = [[1, 5], [2, 4]]
    targets = [
        {'boxes': jnp.array([[0.50, 0.50, 0.30, 0.40]], jnp.float32),
         'size': jnp.array([240.0, 320.0], jnp.float32)},
        {'boxes': jnp.array([[0.30, 0.60, 0.20, 0.25]], jnp.float32),
         'size': jnp.array([256.0, 320.0], jnp.float32)},
    ]

    cfg = Cfg()
    loss_dict, gaussian_gt = set_criterion_forward(cfg, outputs, durations, inter_idx, targets)
    jax.block_until_ready(gaussian_gt)
    for v in loss_dict.values():
        jax.block_until_ready(v)
    print("KERNEL_OK")
</pallas_src>

<mosaic_0001>
module attributes {stable_mosaic.version = 11 : i64} {
  func.func @kernel(%arg0: i32, %arg1: memref<4x2x1xf32, #tpu.memory_space<vmem>>, %arg2: memref<2x2x1xf32, #tpu.memory_space<vmem>>, %arg3: memref<1x256xf32, #tpu.memory_space<vmem>>, %arg4: memref<1x256xf32, #tpu.memory_space<vmem>>, %arg5: memref<2x256xf32, #tpu.memory_space<vmem>>, %arg6: memref<2x2x256xf32, #tpu.memory_space<vmem>>, %arg7: memref<1x2x256xf32, #tpu.memory_space<vmem>>, %arg8: memref<1x256x256xf32, #tpu.memory_space<vmem>>, %arg9: memref<2x2x8xf32, #tpu.memory_space<vmem>>, %arg10: memref<2x8xf32, #tpu.memory_space<vmem>>, %arg11: memref<2x8xf32, #tpu.memory_space<vmem>>, %arg12: memref<2x256xf32, #tpu.memory_space<vmem>>, %arg13: memref<1x6xf32, #tpu.memory_space<smem>>, %arg14: memref<2x256xf32, #tpu.memory_space<vmem>>, %arg15: memref<2x256xf32, #tpu.memory_space<vmem>>) attributes {dimension_semantics = [#tpu.dimension_semantics<arbitrary>], iteration_bounds = array<i64: 2>, scalar_prefetch = 0 : i64, scratch_operands = 2 : i64, tpu.core_type = #tpu.core_type<tc>, window_params = [{pipeline_mode = #tpu.pipeline_mode<synchronous>, transform_indices = @transform_0, window_bounds = array<i64: 4, 2, 1>}, {pipeline_mode = #tpu.pipeline_mode<synchronous>, transform_indices = @transform_1, window_bounds = array<i64: 2, 2, 1>}, {pipeline_mode = #tpu.pipeline_mode<synchronous>, transform_indices = @transform_2, window_bounds = array<i64: 1, 256>}, {pipeline_mode = #tpu.pipeline_mode<synchronous>, transform_indices = @transform_3, window_bounds = array<i64: 1, 256>}, {pipeline_mode = #tpu.pipeline_mode<synchronous>, transform_indices = @transform_4, window_bounds = array<i64: 2, 256>}, {pipeline_mode = #tpu.pipeline_mode<synchronous>, transform_indices = @transform_5, window_bounds = array<i64: 2, 2, 256>}, {transform_indices = @transform_6, window_bounds = array<i64: 1, 2, 256>}, {transform_indices = @transform_7, window_bounds = array<i64: 1, 256, 256>}, {pipeline_mode = #tpu.pipeline_mode<synchronous>, transform_indices = @transform_8, window_bounds = array<i64: 2, 2, 8>}, {pipeline_mode = #tpu.pipeline_mode<synchronous>, transform_indices = @transform_9, window_bounds = array<i64: 2, 8>}, {pipeline_mode = #tpu.pipeline_mode<synchronous>, transform_indices = @transform_10, window_bounds = array<i64: 2, 8>}, {pipeline_mode = #tpu.pipeline_mode<synchronous>, transform_indices = @transform_11, window_bounds = array<i64: 2, 256>}, {transform_indices = @transform_12, window_bounds = array<i64: 1, 6>}]} {
    %c0_i32 = arith.constant 0 : i32
    %0 = arith.cmpi eq, %arg0, %c0_i32 : i32
    %1 = arith.extui %0 : i1 to i32
    %c0_i32_0 = arith.constant 0 : i32
    %2 = arith.cmpi ne, %1, %c0_i32_0 : i32
    scf.if %2 {
      %cst_18 = arith.constant 0.000000e+00 : f32
      %25 = vector.broadcast %cst_18 : f32 to vector<2x256xf32>
      %c0_19 = arith.constant 0 : index
      %c0_20 = arith.constant 0 : index
      %26 = vector.load %arg14[%c0_19, %c0_20] : memref<2x256xf32, #tpu.memory_space<vmem>>, vector<2x256xf32>
      tpu.vector_store %arg14[%c0_19, %c0_20], %25 {strides = array<i32>} : memref<2x256xf32, #tpu.memory_space<vmem>>, vector<2x256xf32>,
      %cst_21 = arith.constant 0.000000e+00 : f32
      %27 = vector.broadcast %cst_21 : f32 to vector<2x256xf32>
      %c0_22 = arith.constant 0 : index
      %c0_23 = arith.constant 0 : index
      %28 = vector.load %arg15[%c0_22, %c0_23] : memref<2x256xf32, #tpu.memory_space<vmem>>, vector<2x256xf32>
      tpu.vector_store %arg15[%c0_22, %c0_23], %27 {strides = array<i32>} : memref<2x256xf32, #tpu.memory_space<vmem>>, vector<2x256xf32>,
    } else {
    }
    %c0 = arith.constant 0 : index
    %c0_1 = arith.constant 0 : index
    %c0_2 = arith.constant 0 : index
    %3 = vector.load %arg7[%c0, %c0_1, %c0_2] : memref<1x2x256xf32, #tpu.memory_space<vmem>>, vector<1x2x256xf32>
    %4 = vector.shape_cast %3 : vector<1x2x256xf32> to vector<2x256xf32>
    %c0_3 = arith.constant 0 : index
    %c0_4 = arith.constant 0 : index
    %c0_5 = arith.constant 0 : index
    %5 = vector.load %arg8[%c0_3, %c0_4, %c0_5] : memref<1x256x256xf32, #tpu.memory_space<vmem>>, vector<1x256x256xf32>
    %6 = vector.shape_cast %5 : vector<1x256x256xf32> to vector<256x256xf32>
    %cst = arith.constant dense<0.000000e+00> : vector<2x256xf32>
    %7 = tpu.matmul %4, %6, %cst {dimension_numbers = #tpu.dot_dimension_numbers<[1], [0], [0], [1], [0, 0, 1, 1], [], []>} : vector<2x256xf32>, vector<256x256xf32>, vector<2x256xf32> -> vector<2x256xf32>
    %c0_6 = arith.constant 0 : index
    %c0_7 = arith.constant 0 : index
    %8 = vector.load %arg14[%c0_6, %c0_7] : memref<2x256xf32, #tpu.memory_space<vmem>>, vector<2x256xf32>
    %9 = math.log %7 : vector<2x256xf32>
    %cst_8 = arith.constant -1.000000e+02 : f32
    %10 = vector.broadcast %cst_8 : f32 to vector<2x256xf32>
    %11 = arith.maximumf %9, %10 : vector<2x256xf32>
    %12 = arith.addf %8, %11 : vector<2x256xf32>
    %c0_9 = arith.constant 0 : index
    %c0_10 = arith.constant 0 : index
    %13 = vector.load %arg14[%c0_9, %c0_10] : memref<2x256xf32, #tpu.memory_space<vmem>>, vector<2x256xf32>
    tpu.vector_store %arg14[%c0_9, %c0_10], %12 {strides = array<i32>} : memref<2x256xf32, #tpu.memory_space<vmem>>, vector<2x256xf32>,
    %c0_11 = arith.constant 0 : index
    %c0_12 = arith.constant 0 : index
    %14 = vector.load %arg15[%c0_11, %c0_12] : memref<2x256xf32, #tpu.memory_space<vmem>>, vector<2x256xf32>
    %cst_13 = arith.constant 1.000000e+00 : f32
    %15 = vector.broadcast %cst_13 : f32 to vector<2x256xf32>
    %16 = arith.subf %15, %7 : vector<2x256xf32>
    %17 = math.log %16 : vector<2x256xf32>
    %cst_14 = arith.constant -1.000000e+02 : f32
    %18 = vector.broadcast %cst_14 : f32 to vector<2x256xf32>
    %19 = arith.maximumf %17, %18 : vector<2x256xf32>
    %20 = arith.addf %14, %19 : vector<2x256xf32>
    %c0_15 = arith.constant 0 : index
    %c0_16 = arith.constant 0 : index
    %21 = vector.load %arg15[%c0_15, %c0_16] : memref<2x256xf32, #tpu.memory_space<vmem>>, vector<2x256xf32>
    tpu.vector_store %arg15[%c0_15, %c0_16], %20 {strides = array<i32>} : memref<2x256xf32, #tpu.memory_space<vmem>>, vector<2x256xf32>,
    %c1_i32 = arith.constant 1 : i32
    %22 = arith.cmpi eq, %arg0, %c1_i32 : i32
    %23 = arith.extui %22 : i1 to i32
    %c0_i32_17 = arith.constant 0 : i32
    %24 = arith.cmpi ne, %23, %c0_i32_17 : i32
    scf.if %24 {
      %c0_18 = arith.constant 0 : index
      %c0_19 = arith.constant 0 : index
      %c0_20 = arith.constant 0 : index
      %25 = vector.load %arg1[%c0_18, %c0_19, %c0_20] : memref<4x2x1xf32, #tpu.memory_space<vmem>>, vector<1x2x1xf32>
      %26 = vector.shape_cast %25 : vector<1x2x1xf32> to vector<2x1xf32>
      %c1 = arith.constant 1 : index
      %c0_21 = arith.constant 0 : index
      %c0_22 = arith.constant 0 : index
      %27 = vector.load %arg1[%c1, %c0_21, %c0_22] : memref<4x2x1xf32, #tpu.memory_space<vmem>>, vector<1x2x1xf32>
      %28 = vector.shape_cast %27 : vector<1x2x1xf32> to vector<2x1xf32>
      %c2 = arith.constant 2 : index
      %c0_23 = arith.constant 0 : index
      %c0_24 = arith.constant 0 : index
      %29 = vector.load %arg1[%c2, %c0_23, %c0_24] : memref<4x2x1xf32, #tpu.memory_space<vmem>>, vector<1x2x1xf32>
      %30 = vector.shape_cast %29 : vector<1x2x1xf32> to vector<2x1xf32>
      %cst_25 = arith.constant 1.600000e+01 : f32
      %31 = vector.broadcast %cst_25 : f32 to vector<2x1xf32>
      %32 = arith.mulf %30, %31 : vector<2x1xf32>
      %c3 = arith.constant 3 : index
      %c0_26 = arith.constant 0 : index
      %c0_27 = arith.constant 0 : index
      %33 = vector.load %arg1[%c3, %c0_26, %c0_27] : memref<4x2x1xf32, #tpu.memory_space<vmem>>, vector<1x2x1xf32>
      %34 = vector.shape_cast %33 : vector<1x2x1xf32> to vector<2x1xf32>
      %cst_28 = arith.constant 1.600000e+01 : f32
      %35 = vector.broadcast %cst_28 : f32 to vector<2x1xf32>
      %36 = arith.mulf %34, %35 : vector<2x1xf32>
      %c0_29 = arith.constant 0 : index
      %c0_30 = arith.constant 0 : index
      %37 = vector.load %arg3[%c0_29, %c0_30] : memref<1x256xf32, #tpu.memory_space<vmem>>, vector<1x256xf32>
      %c0_31 = arith.constant 0 : index
      %c0_32 = arith.constant 0 : index
      %38 = vector.load %arg4[%c0_31, %c0_32] : memref<1x256xf32, #tpu.memory_space<vmem>>, vector<1x256xf32>
      %39 = vector.broadcast %37 : vector<1x256xf32> to vector<2x256xf32>
      %40 = vector.broadcast %26 : vector<2x1xf32> to vector<2x256xf32>
      %41 = arith.subf %39, %40 : vector<2x256xf32>
      %42 = arith.mulf %41, %41 : vector<2x256xf32>
      %43 = vector.broadcast %38 : vector<1x256xf32> to vector<2x256xf32>
      %44 = vector.broadcast %28 : vector<2x1xf32> to vector<2x256xf32>
      %45 = arith.subf %43, %44 : vector<2x256xf32>
      %46 = arith.mulf %45, %45 : vector<2x256xf32>
      %47 = arith.addf %42, %46 : vector<2x256xf32>
      %cst_33 = arith.constant 0.000000e+00 : f32
      %48 = vector.broadcast %cst_33 : f32 to vector<2x256xf32>
      %49 = arith.subf %48, %47 : vector<2x256xf32>
      %cst_34 = arith.constant 2.000000e+02 : f32
      %50 = vector.broadcast %cst_34 : f32 to vector<2x256xf32>
      %51 = arith.mulf %49, %50 : vector<2x256xf32>
      %52 = math.exp %51 : vector<2x256xf32>
      %c0_35 = arith.constant 0 : index
      %c0_36 = arith.constant 0 : index
      %53 = vector.load %arg12[%c0_35, %c0_36] : memref<2x256xf32, #tpu.memory_space<vmem>>, vector<2x256xf32>
      tpu.vector_store %arg12[%c0_35, %c0_36], %52 {strides = array<i32>} : memref<2x256xf32, #tpu.memory_space<vmem>>, vector<2x256xf32>,
      %c0_37 = arith.constant 0 : index
      %c0_38 = arith.constant 0 : index
      %54 = vector.load %arg5[%c0_37, %c0_38] : memref<2x256xf32, #tpu.memory_space<vmem>>, vector<2x256xf32>
      %55 = math.log %54 : vector<2x256xf32>
      %cst_39 = arith.constant -1.000000e+02 : f32
      %56 = vector.broadcast %cst_39 : f32 to vector<2x256xf32>
      %57 = arith.maximumf %55, %56 : vector<2x256xf32>
      %cst_40 = arith.constant 1.000000e+00 : f32
      %58 = vector.broadcast %cst_40 : f32 to vector<2x256xf32>
      %59 = arith.subf %58, %54 : vector<2x256xf32>
      %60 = math.log %59 : vector<2x256xf32>
      %cst_41 = arith.constant -1.000000e+02 : f32
      %61 = vector.broadcast %cst_41 : f32 to vector<2x256xf32>
      %62 = arith.maximumf %60, %61 : vector<2x256xf32>
      %63 = arith.mulf %52, %57 : vector<2x256xf32>
      %cst_42 = arith.constant 1.000000e+00 : f32
      %64 = vector.broadcast %cst_42 : f32 to vector<2x256xf32>
      %65 = arith.subf %64, %52 : vector<2x256xf32>
      %66 = arith.mulf %65, %62 : vector<2x256xf32>
      %67 = arith.addf %63, %66 : vector<2x256xf32>
      %cst_43 = arith.constant 0.000000e+00 : f32
      %68 = vector.broadcast %cst_43 : f32 to vector<2x256xf32>
      %69 = arith.subf %68, %67 : vector<2x256xf32>
      %70 = vector.shape_cast %69 : vector<2x256xf32> to vector<1x2x256xf32>
      %cst_44 = arith.constant dense<0.000000e+00> : vector<1xf32>
      %71 = vector.multi_reduction <add>, %70, %cst_44 [1, 2] : vector<1x2x256xf32> to vector<1xf32>
      %72 = vector.shape_cast %71 : vector<1xf32> to vector<1x1x1xf32>
      %73 = vector.extract %72[0, 0, 0] : f32 from vector<1x1x1xf32>
      %c0_45 = arith.constant 0 : index
      %c0_46 = arith.constant 0 : index
      %c0_47 = arith.constant 0 : index
      %74 = vector.load %arg6[%c0_45, %c0_46, %c0_47] : memref<2x2x256xf32, #tpu.memory_space<vmem>>, vector<1x2x256xf32>
      %75 = vector.shape_cast %74 : vector<1x2x256xf32> to vector<2x256xf32>
      %76 = vector.broadcast %32 : vector<2x1xf32> to vector<2x256xf32>
      %77 = arith.subf %75, %76 : vector<2x256xf32>
      %78 = arith.mulf %77, %52 : vector<2x256xf32>
      %c1_48 = arith.constant 1 : index
      %c0_49 = arith.constant 0 : index
      %c0_50 = arith.constant 0 : index
      %79 = vector.load %arg6[%c1_48, %c0_49, %c0_50] : memref<2x2x256xf32, #tpu.memory_space<vmem>>, vector<1x2x256xf32>
      %80 = vector.shape_cast %79 : vector<1x2x256xf32> to vector<2x256xf32>
      %81 = vector.broadcast %36 : vector<2x1xf32> to vector<2x256xf32>
      %82 = arith.subf %80, %81 : vector<2x256xf32>
      %83 = arith.mulf %82, %52 : vector<2x256xf32>
      %84 = math.absf %78 : vector<2x256xf32>
      %cst_51 = arith.constant 1.000000e+00 : f32
      %85 = vector.broadcast %cst_51 : f32 to vector<2x256xf32>
      %86 = arith.cmpf olt, %84, %85 : vector<2x256xf32>
      %cst_52 = arith.constant 5.000000e-01 : f32
      %87 = vector.broadcast %cst_52 : f32 to vector<2x256xf32>
      %88 = arith.mulf %87, %78 : vector<2x256xf32>
      %89 = arith.mulf %88, %78 : vector<2x256xf32>
      %cst_53 = arith.constant 5.000000e-01 : f32
      %90 = vector.broadcast %cst_53 : f32 to vector<2x256xf32>
      %91 = arith.subf %84, %90 : vector<2x256xf32>
      %92 = arith.select %86, %89, %91 : vector<2x256xi1>, vector<2x256xf32>
      %93 = math.absf %83 : vector<2x256xf32>
      %cst_54 = arith.constant 1.000000e+00 : f32
      %94 = vector.broadcast %cst_54 : f32 to vector<2x256xf32>
      %95 = arith.cmpf olt, %93, %94 : vector<2x256xf32>
      %cst_55 = arith.constant 5.000000e-01 : f32
      %96 = vector.broadcast %cst_55 : f32 to vector<2x256xf32>
      %97 = arith.mulf %96, %83 : vector<2x256xf32>
      %98 = arith.mulf %97, %83 : vector<2x256xf32>
      %cst_56 = arith.constant 5.000000e-01 : f32
      %99 = vector.broadcast %cst_56 : f32 to vector<2x256xf32>
      %100 = arith.subf %93, %99 : vector<2x256xf32>
      %101 = arith.select %95, %98, %100 : vector<2x256xi1>, vector<2x256xf32>
      %102 = arith.addf %92, %101 : vector<2x256xf32>
      %103 = vector.shape_cast %102 : vector<2x256xf32> to vector<1x2x256xf32>
      %cst_57 = arith.constant dense<0.000000e+00> : vector<1xf32>
      %104 = vector.multi_reduction <add>, %103, %cst_57 [1, 2] : vector<1x2x256xf32> to vector<1xf32>
      %105 = vector.shape_cast %104 : vector<1xf32> to vector<1x1x1xf32>
      %106 = vector.extract %105[0, 0, 0] : f32 from vector<1x1x1xf32>
      %c0_58 = arith.constant 0 : index
      %c0_59 = arith.constant 0 : index
      %107 = vector.load %arg14[%c0_58, %c0_59] : memref<2x256xf32, #tpu.memory_space<vmem>>, vector<2x256xf32>
      %108 = arith.mulf %52, %107 : vector<2x256xf32>
      %cst_60 = arith.constant 1.000000e+00 : f32
      %109 = vector.broadcast %cst_60 : f32 to vector<2x256xf32>
      %110 = arith.subf %109, %52 : vector<2x256xf32>
      %c0_61 = arith.constant 0 : index
      %c0_62 = arith.constant 0 : index
      %111 = vector.load %arg15[%c0_61, %c0_62] : memref<2x256xf32, #tpu.memory_space<vmem>>, vector<2x256xf32>
      %112 = arith.mulf %110, %111 : vector<2x256xf32>
      %113 = arith.addf %108, %112 : vector<2x256xf32>
      %114 = vector.shape_cast %113 : vector<2x256xf32> to vector<1x2x256xf32>
      %cst_63 = arith.constant dense<0.000000e+00> : vector<1xf32>
      %115 = vector.multi_reduction <add>, %114, %cst_63 [1, 2] : vector<1x2x256xf32> to vector<1xf32>
      %116 = vector.shape_cast %115 : vector<1xf32> to vector<1x1x1xf32>
      %117 = vector.extract %116[0, 0, 0] : f32 from vector<1x1x1xf32>
      %cst_64 = arith.constant 0.000000e+00 : f32
      %118 = arith.subf %cst_64, %117 : f32
      %119 = tpu.iota {dimensions = array<i32: 1>} : vector<2x8xi32>
      %120 = arith.sitofp %119 : vector<2x8xi32> to vector<2x8xf32>
      %c0_65 = arith.constant 0 : index
      %c0_66 = arith.constant 0 : index
      %c0_67 = arith.constant 0 : index
      %121 = vector.load %arg2[%c0_65, %c0_66, %c0_67] : memref<2x2x1xf32, #tpu.memory_space<vmem>>, vector<1x2x1xf32>
      %122 = vector.shape_cast %121 : vector<1x2x1xf32> to vector<2x1xf32>
      %c1_68 = arith.constant 1 : index
      %c0_69 = arith.constant 0 : index
      %c0_70 = arith.constant 0 : index
      %123 = vector.load %arg2[%c1_68, %c0_69, %c0_70] : memref<2x2x1xf32, #tpu.memory_space<vmem>>, vector<1x2x1xf32>
      %124 = vector.shape_cast %123 : vector<1x2x1xf32> to vector<2x1xf32>
      %125 = vector.broadcast %122 : vector<2x1xf32> to vector<2x8xf32>
      %126 = arith.cmpf oge, %120, %125 : vector<2x8xf32>
      %127 = vector.broadcast %124 : vector<2x1xf32> to vector<2x8xf32>
      %128 = arith.cmpf ole, %120, %127 : vector<2x8xf32>
      %129 = arith.andi %126, %128 : vector<2x8xi1>
      %130 = arith.extui %129 : vector<2x8xi1> to vector<2x8xi32>
      %131 = arith.sitofp %130 : vector<2x8xi32> to vector<2x8xf32>
      %c0_71 = arith.constant 0 : index
      %c0_72 = arith.constant 0 : index
      %c0_73 = arith.constant 0 : index
      %132 = vector.load %arg9[%c0_71, %c0_72, %c0_73] : memref<2x2x8xf32, #tpu.memory_space<vmem>>, vector<1x2x8xf32>
      %133 = vector.shape_cast %132 : vector<1x2x8xf32> to vector<2x8xf32>
      %c1_74 = arith.constant 1 : index
      %c0_75 = arith.constant 0 : index
      %c0_76 = arith.constant 0 : index
      %134 = vector.load %arg9[%c1_74, %c0_75, %c0_76] : memref<2x2x8xf32, #tpu.memory_space<vmem>>, vector<1x2x8xf32>
      %135 = vector.shape_cast %134 : vector<1x2x8xf32> to vector<2x8xf32>
      %136 = vector.broadcast %122 : vector<2x1xf32> to vector<2x8xf32>
      %137 = arith.subf %120, %136 : vector<2x8xf32>
      %138 = arith.mulf %137, %131 : vector<2x8xf32>
      %139 = vector.broadcast %124 : vector<2x1xf32> to vector<2x8xf32>
      %140 = arith.subf %139, %120 : vector<2x8xf32>
      %141 = arith.mulf %140, %131 : vector<2x8xf32>
      %142 = arith.mulf %133, %131 : vector<2x8xf32>
      %143 = arith.subf %142, %138 : vector<2x8xf32>
      %144 = math.absf %143 : vector<2x8xf32>
      %cst_77 = arith.constant 1.000000e+00 : f32
      %145 = vector.broadcast %cst_77 : f32 to vector<2x8xf32>
      %146 = arith.cmpf olt, %144, %145 : vector<2x8xf32>
      %cst_78 = arith.constant 5.000000e-01 : f32
      %147 = vector.broadcast %cst_78 : f32 to vector<2x8xf32>
      %148 = arith.mulf %147, %143 : vector<2x8xf32>
      %149 = arith.mulf %148, %143 : vector<2x8xf32>
      %cst_79 = arith.constant 5.000000e-01 : f32
      %150 = vector.broadcast %cst_79 : f32 to vector<2x8xf32>
      %151 = arith.subf %144, %150 : vector<2x8xf32>
      %152 = arith.select %146, %149, %151 : vector<2x8xi1>, vector<2x8xf32>
      %153 = arith.mulf %135, %131 : vector<2x8xf32>
      %154 = arith.subf %153, %141 : vector<2x8xf32>
      %155 = math.absf %154 : vector<2x8xf32>
      %cst_80 = arith.constant 1.000000e+00 : f32
      %156 = vector.broadcast %cst_80 : f32 to vector<2x8xf32>
      %157 = arith.cmpf olt, %155, %156 : vector<2x8xf32>
      %cst_81 = arith.constant 5.000000e-01 : f32
      %158 = vector.broadcast %cst_81 : f32 to vector<2x8xf32>
      %159 = arith.mulf %158, %154 : vector<2x8xf32>
      %160 = arith.mulf %159, %154 : vector<2x8xf32>
      %cst_82 = arith.constant 5.000000e-01 : f32
      %161 = vector.broadcast %cst_82 : f32 to vector<2x8xf32>
      %162 = arith.subf %155, %161 : vector<2x8xf32>
      %163 = arith.select %157, %160, %162 : vector<2x8xi1>, vector<2x8xf32>
      %164 = arith.addf %152, %163 : vector<2x8xf32>
      %165 = vector.shape_cast %164 : vector<2x8xf32> to vector<1x2x8xf32>
      %cst_83 = arith.constant dense<0.000000e+00> : vector<1xf32>
      %166 = vector.multi_reduction <add>, %165, %cst_83 [1, 2] : vector<1x2x8xf32> to vector<1xf32>
      %167 = vector.shape_cast %166 : vector<1xf32> to vector<1x1x1xf32>
      %168 = vector.extract %167[0, 0, 0] : f32 from vector<1x1x1xf32>
      %c0_84 = arith.constant 0 : index
      %c0_85 = arith.constant 0 : index
      %169 = vector.load %arg10[%c0_84, %c0_85] : memref<2x8xf32, #tpu.memory_space<vmem>>, vector<2x8xf32>
      %170 = math.log %169 : vector<2x8xf32>
      %cst_86 = arith.constant -1.000000e+02 : f32
      %171 = vector.broadcast %cst_86 : f32 to vector<2x8xf32>
      %172 = arith.maximumf %170, %171 : vector<2x8xf32>
      %cst_87 = arith.constant 1.000000e+00 : f32
      %173 = vector.broadcast %cst_87 : f32 to vector<2x8xf32>
      %174 = arith.subf %173, %169 : vector<2x8xf32>
      %175 = math.log %174 : vector<2x8xf32>
      %cst_88 = arith.constant -1.000000e+02 : f32
      %176 = vector.broadcast %cst_88 : f32 to vector<2x8xf32>
      %177 = arith.maximumf %175, %176 : vector<2x8xf32>
      %178 = arith.mulf %131, %172 : vector<2x8xf32>
      %cst_89 = arith.constant 1.000000e+00 : f32
      %179 = vector.broadcast %cst_89 : f32 to vector<2x8xf32>
      %180 = arith.subf %179, %131 : vector<2x8xf32>
      %181 = arith.mulf %180, %177 : vector<2x8xf32>
      %182 = arith.addf %178, %181 : vector<2x8xf32>
      %cst_90 = arith.constant 0.000000e+00 : f32
      %183 = vector.broadcast %cst_90 : f32 to vector<2x8xf32>
      %184 = arith.subf %183, %182 : vector<2x8xf32>
      %185 = vector.shape_cast %184 : vector<2x8xf32> to vector<1x2x8xf32>
      %cst_91 = arith.constant dense<0.000000e+00> : vector<1xf32>
      %186 = vector.multi_reduction <add>, %185, %cst_91 [1, 2] : vector<1x2x8xf32> to vector<1xf32>
      %187 = vector.shape_cast %186 : vector<1xf32> to vector<1x1x1xf32>
      %188 = vector.extract %187[0, 0, 0] : f32 from vector<1x1x1xf32>
      %189 = arith.subf %120, %133 : vector<2x8xf32>
      %cst_92 = arith.constant 1.250000e-01 : f32
      %190 = vector.broadcast %cst_92 : f32 to vector<2x8xf32>
      %191 = arith.mulf %189, %190 : vector<2x8xf32>
      %cst_93 = arith.constant 0.000000e+00 : f32
      %cst_94 = arith.constant 1.000000e+00 : f32
      %192 = vector.broadcast %cst_93 : f32 to vector<2x8xf32>
      %193 = arith.maximumf %192, %191 : vector<2x8xf32>
      %194 = vector.broadcast %cst_94 : f32 to vector<2x8xf32>
      %195 = arith.minimumf %194, %193 : vector<2x8xf32>
      %196 = arith.addf %120, %135 : vector<2x8xf32>
      %cst_95 = arith.constant 1.250000e-01 : f32
      %197 = vector.broadcast %cst_95 : f32 to vector<2x8xf32>
      %198 = arith.mulf %196, %197 : vector<2x8xf32>
      %cst_96 = arith.constant 0.000000e+00 : f32
      %cst_97 = arith.constant 1.000000e+00 : f32
      %199 = vector.broadcast %cst_96 : f32 to vector<2x8xf32>
      %200 = arith.maximumf %199, %198 : vector<2x8xf32>
      %201 = vector.broadcast %cst_97 : f32 to vector<2x8xf32>
      %202 = arith.minimumf %201, %200 : vector<2x8xf32>
      %cst_98 = arith.constant 1.250000e-01 : f32
      %203 = vector.broadcast %cst_98 : f32 to vector<2x1xf32>
      %204 = arith.mulf %122, %203 : vector<2x1xf32>
      %cst_99 = arith.constant 1.250000e-01 : f32
      %205 = vector.broadcast %cst_99 : f32 to vector<2x1xf32>
      %206 = arith.mulf %124, %205 : vector<2x1xf32>
      %207 = vector.broadcast %206 : vector<2x1xf32> to vector<2x8xf32>
      %208 = arith.minimumf %202, %207 : vector<2x8xf32>
      %209 = vector.broadcast %204 : vector<2x1xf32> to vector<2x8xf32>
      %210 = arith.maximumf %195, %209 : vector<2x8xf32>
      %211 = arith.subf %208, %210 : vector<2x8xf32>
      %cst_100 = arith.constant 0.000000e+00 : f32
      %212 = vector.broadcast %cst_100 : f32 to vector<2x8xf32>
      %213 = arith.maximumf %211, %212 : vector<2x8xf32>
      %214 = arith.subf %202, %195 : vector<2x8xf32>
      %215 = arith.subf %206, %204 : vector<2x1xf32>
      %216 = vector.broadcast %215 : vector<2x1xf32> to vector<2x8xf32>
      %217 = arith.addf %214, %216 : vector<2x8xf32>
      %218 = arith.subf %217, %213 : vector<2x8xf32>
      %cst_101 = arith.constant 9.99999997E-7 : f32
      %219 = vector.broadcast %cst_101 : f32 to vector<2x8xf32>
      %220 = arith.maximumf %218, %219 : vector<2x8xf32>
      %221 = arith.divf %213, %220 : vector<2x8xf32>
      %cst_102 = arith.constant 5.000000e-01 : f32
      %222 = vector.broadcast %cst_102 : f32 to vector<2x8xf32>
      %223 = arith.cmpf ogt, %221, %222 : vector<2x8xf32>
      %224 = arith.extui %223 : vector<2x8xi1> to vector<2x8xi32>
      %225 = arith.sitofp %224 : vector<2x8xi32> to vector<2x8xf32>
      %c0_103 = arith.constant 0 : index
      %c0_104 = arith.constant 0 : index
      %226 = vector.load %arg11[%c0_103, %c0_104] : memref<2x8xf32, #tpu.memory_space<vmem>>, vector<2x8xf32>
      %227 = math.log %226 : vector<2x8xf32>
      %cst_105 = arith.constant -1.000000e+02 : f32
      %228 = vector.broadcast %cst_105 : f32 to vector<2x8xf32>
      %229 = arith.maximumf %227, %228 : vector<2x8xf32>
      %cst_106 = arith.constant 1.000000e+00 : f32
      %230 = vector.broadcast %cst_106 : f32 to vector<2x8xf32>
      %231 = arith.subf %230, %226 : vector<2x8xf32>
      %232 = math.log %231 : vector<2x8xf32>
      %cst_107 = arith.constant -1.000000e+02 : f32
      %233 = vector.broadcast %cst_107 : f32 to vector<2x8xf32>
      %234 = arith.maximumf %232, %233 : vector<2x8xf32>
      %235 = arith.mulf %221, %229 : vector<2x8xf32>
      %cst_108 = arith.constant 1.000000e+00 : f32
      %236 = vector.broadcast %cst_108 : f32 to vector<2x8xf32>
      %237 = arith.subf %236, %221 : vector<2x8xf32>
      %238 = arith.mulf %237, %234 : vector<2x8xf32>
      %239 = arith.addf %235, %238 : vector<2x8xf32>
      %cst_109 = arith.constant 0.000000e+00 : f32
      %240 = vector.broadcast %cst_109 : f32 to vector<2x8xf32>
      %241 = arith.subf %240, %239 : vector<2x8xf32>
      %242 = arith.mulf %241, %225 : vector<2x8xf32>
      %243 = vector.shape_cast %242 : vector<2x8xf32> to vector<1x2x8xf32>
      %cst_110 = arith.constant dense<0.000000e+00> : vector<1xf32>
      %244 = vector.multi_reduction <add>, %243, %cst_110 [1, 2] : vector<1x2x8xf32> to vector<1xf32>
      %245 = vector.shape_cast %244 : vector<1xf32> to vector<1x1x1xf32>
      %246 = vector.extract %245[0, 0, 0] : f32 from vector<1x1x1xf32>
      %247 = vector.shape_cast %225 : vector<2x8xf32> to vector<1x2x8xf32>
      %cst_111 = arith.constant dense<0.000000e+00> : vector<1xf32>
      %248 = vector.multi_reduction <add>, %247, %cst_111 [1, 2] : vector<1x2x8xf32> to vector<1xf32>
      %249 = vector.shape_cast %248 : vector<1xf32> to vector<1x1x1xf32>
      %250 = vector.extract %249[0, 0, 0] : f32 from vector<1x1x1xf32>
      %cst_112 = arith.constant 0.001953125 : f32
      %251 = arith.mulf %73, %cst_112 : f32
      %c0_113 = arith.constant 0 : index
      %c0_114 = arith.constant 0 : index
      %252 = memref.load %arg13[%c0_113, %c0_114] : memref<1x6xf32, #tpu.memory_space<smem>>
      memref.store %251, %arg13[%c0_113, %c0_114] : memref<1x6xf32, #tpu.memory_space<smem>>
      %cst_115 = arith.constant 9.765625E-4 : f32
      %253 = arith.mulf %106, %cst_115 : f32
      %c0_116 = arith.constant 0 : index
      %c1_117 = arith.constant 1 : index
      %254 = memref.load %arg13[%c0_116, %c1_117] : memref<1x6xf32, #tpu.memory_space<smem>>
      memref.store %253, %arg13[%c0_116, %c1_117] : memref<1x6xf32, #tpu.memory_space<smem>>
      %cst_118 = arith.constant 0.001953125 : f32
      %255 = arith.mulf %118, %cst_118 : f32
      %c0_119 = arith.constant 0 : index
      %c2_120 = arith.constant 2 : index
      %256 = memref.load %arg13[%c0_119, %c2_120] : memref<1x6xf32, #tpu.memory_space<smem>>
      memref.store %255, %arg13[%c0_119, %c2_120] : memref<1x6xf32, #tpu.memory_space<smem>>
      %cst_121 = arith.constant 6.250000e-02 : f32
      %257 = arith.mulf %188, %cst_121 : f32
      %c0_122 = arith.constant 0 : index
      %c3_123 = arith.constant 3 : index
      %258 = memref.load %arg13[%c0_122, %c3_123] : memref<1x6xf32, #tpu.memory_space<smem>>
      memref.store %257, %arg13[%c0_122, %c3_123] : memref<1x6xf32, #tpu.memory_space<smem>>
      %cst_124 = arith.constant 3.125000e-02 : f32
      %259 = arith.mulf %168, %cst_124 : f32
      %c0_125 = arith.constant 0 : index
      %c4 = arith.constant 4 : index
      %260 = memref.load %arg13[%c0_125, %c4] : memref<1x6xf32, #tpu.memory_space<smem>>
      memref.store %259, %arg13[%c0_125, %c4] : memref<1x6xf32, #tpu.memory_space<smem>>
      %cst_126 = arith.constant 0.000000e+00 : f32
      %261 = arith.cmpf ogt, %250, %cst_126 : f32
      %cst_127 = arith.constant 1.000000e+00 : f32
      %262 = arith.maximumf %250, %cst_127 : f32
      %263 = arith.divf %246, %262 : f32
      %cst_128 = arith.constant 0.000000e+00 : f32
      %264 = arith.select %261, %263, %cst_128 : f32
      %c0_129 = arith.constant 0 : index
      %c5 = arith.constant 5 : index
      %265 = memref.load %arg13[%c0_129, %c5] : memref<1x6xf32, #tpu.memory_space<smem>>
      memref.store %264, %arg13[%c0_129, %c5] : memref<1x6xf32, #tpu.memory_space<smem>>
    } else {
    }
    return
  }
  func.func @transform_0(%arg0: i32) -> (i32, i32, i32) {
    %c0_i32 = arith.constant 0 : i32
    %c0_i32_0 = arith.constant 0 : i32
    %c0_i32_1 = arith.constant 0 : i32
    %c0_i32_2 = arith.constant 0 : i32
    return %c0_i32, %c0_i32_0, %c0_i32_1 : i32, i32, i32
  }
  func.func @transform_1(%arg0: i32) -> (i32, i32, i32) {
    %c0_i32 = arith.constant 0 : i32
    %c0_i32_0 = arith.constant 0 : i32
    %c0_i32_1 = arith.constant 0 : i32
    %c0_i32_2 = arith.constant 0 : i32
    return %c0_i32, %c0_i32_0, %c0_i32_1 : i32, i32, i32
  }
  func.func @transform_2(%arg0: i32) -> (i32, i32) {
    %c0_i32 = arith.constant 0 : i32
    %c0_i32_0 = arith.constant 0 : i32
    %c0_i32_1 = arith.constant 0 : i32
    return %c0_i32, %c0_i32_0 : i32, i32
  }
  func.func @transform_3(%arg0: i32) -> (i32, i32) {
    %c0_i32 = arith.constant 0 : i32
    %c0_i32_0 = arith.constant 0 : i32
    %c0_i32_1 = arith.constant 0 : i32
    return %c0_i32, %c0_i32_0 : i32, i32
  }
  func.func @transform_4(%arg0: i32) -> (i32, i32) {
    %c0_i32 = arith.constant 0 : i32
    %c0_i32_0 = arith.constant 0 : i32
    %c0_i32_1 = arith.constant 0 : i32
    return %c0_i32, %c0_i32_0 : i32, i32
  }
  func.func @transform_5(%arg0: i32) -> (i32, i32, i32) {
    %c0_i32 = arith.constant 0 : i32
    %c0_i32_0 = arith.constant 0 : i32
    %c0_i32_1 = arith.constant 0 : i32
    %c0_i32_2 = arith.constant 0 : i32
    return %c0_i32, %c0_i32_0, %c0_i32_1 : i32, i32, i32
  }
  func.func @transform_6(%arg0: i32) -> (i32, i32, i32) {
    %c0_i32 = arith.constant 0 : i32
    %c0_i32_0 = arith.constant 0 : i32
    %c0_i32_1 = arith.constant 0 : i32
    return %arg0, %c0_i32, %c0_i32_0 : i32, i32, i32
  }
  func.func @transform_7(%arg0: i32) -> (i32, i32, i32) {
    %c0_i32 = arith.constant 0 : i32
    %c0_i32_0 = arith.constant 0 : i32
    %c0_i32_1 = arith.constant 0 : i32
    return %arg0, %c0_i32, %c0_i32_0 : i32, i32, i32
  }
  func.func @transform_8(%arg0: i32) -> (i32, i32, i32) {
    %c0_i32 = arith.constant 0 : i32
    %c0_i32_0 = arith.constant 0 : i32
    %c0_i32_1 = arith.constant 0 : i32
    %c0_i32_2 = arith.constant 0 : i32
    return %c0_i32, %c0_i32_0, %c0_i32_1 : i32, i32, i32
  }
  func.func @transform_9(%arg0: i32) -> (i32, i32) {
    %c0_i32 = arith.constant 0 : i32
    %c0_i32_0 = arith.constant 0 : i32
    %c0_i32_1 = arith.constant 0 : i32
    return %c0_i32, %c0_i32_0 : i32, i32
  }
  func.func @transform_10(%arg0: i32) -> (i32, i32) {
    %c0_i32 = arith.constant 0 : i32
    %c0_i32_0 = arith.constant 0 : i32
    %c0_i32_1 = arith.constant 0 : i32
    return %c0_i32, %c0_i32_0 : i32, i32
  }
  func.func @transform_11(%arg0: i32) -> (i32, i32) {
    %c0_i32 = arith.constant 0 : i32
    %c0_i32_0 = arith.constant 0 : i32
    %c0_i32_1 = arith.constant 0 : i32
    return %c0_i32, %c0_i32_0 : i32, i32
  }
  func.func @transform_12(%arg0: i32) -> (i32, i32) {
    %c0_i32 = arith.constant 0 : i32
    %c0_i32_0 = arith.constant 0 : i32
    %c0_i32_1 = arith.constant 0 : i32
    return %c0_i32, %c0_i32_0 : i32, i32
  }
}

</mosaic_0001>

<llo_original>
// kernel: tpu_custom_call.1
$region0: #{tpu_custom_call.1}
  #allocation0 [shape = 'u32[]', space=smem, size = 0x4, offset = 0x4, fixed_abs, tag = 'smem constant byte address 0x4 - core index']
  #allocation1 [shape = 'u32[144,128]{1,0:T(1,128)}', space=vmem, size = 0x12000, scoped, tag = 'internal scratch']
  #allocation2 [shape = 'f32[2,256]{1,0:T(2,128)}', space=vmem, size = 0x800, scoped, tag = 'scratch operand']
  #allocation3 [shape = 'f32[2,256]{1,0:T(2,128)}', space=vmem, size = 0x800, scoped, tag = 'scratch operand']
  %s0 = inlined_call_operand.vmem [shape: f32[4,2,1], index: 0, kind: input, shape index: {}]
  %s1 = inlined_call_operand.vmem [shape: f32[2,2,1], index: 1, kind: input, shape index: {}]
  %s2 = inlined_call_operand.vmem [shape: f32[1,256], index: 2, kind: input, shape index: {}]
  %s3 = inlined_call_operand.hbm [shape: f32[1,256], index: 3, kind: input, shape index: {}]
  %s4 = inlined_call_operand.vmem [shape: f32[2,256], index: 4, kind: input, shape index: {}]
  %s5 = inlined_call_operand.vmem [shape: f32[2,2,256], index: 5, kind: input, shape index: {}]
  %s6 = inlined_call_operand.vmem [shape: f32[2,2,256], index: 6, kind: input, shape index: {}]
  %s7 = inlined_call_operand.hbm [shape: f32[2,256,256], index: 7, kind: input, shape index: {}]
  %s8 = inlined_call_operand.vmem [shape: f32[2,2,8], index: 8, kind: input, shape index: {}]
  %s9 = inlined_call_operand.vmem [shape: f32[2,8], index: 9, kind: input, shape index: {}]
  %s10 = inlined_call_operand.vmem [shape: f32[2,8], index: 10, kind: input, shape index: {}]
  %s11 = inlined_call_operand.hbm [shape: f32[2,256], index: 11, kind: output, shape index: {0}]
  %s12 = inlined_call_operand.hbm [shape: f32[1,6], index: 12, kind: output, shape index: {1}]
  %13 = xla_tuple %s11, %s12
  %s14 = sld [smem:[#allocation0]]
  $region101: #{tpu_custom_call.1} parent=0
    _
  %s16 = ssub.s32 1, %s14
  %s17 = scalar_select 0, %s16, %s14
  $region1: #{tpu_custom_call.1} parent=0
    #allocation4 [shape = 'u8[1024]{0}', space=vmem, size = 0x400, scoped, tag = 'input window, operand 3, single buffered']
    #allocation5 [shape = 's32[2]{0}', space=sflag, size = 0x8, scoped, tag = 'scoped memory for tpu_custom_call.1']
    #allocation6 [shape = 's32[2]{0}', space=sflag, size = 0x8, scoped, tag = 'scoped memory for tpu_custom_call.1']
    #allocation7 [shape = 's32[2]{0}', space=sflag, size = 0x8, scoped, tag = 'scoped memory for tpu_custom_call.1']
    #allocation8 [shape = 'u8[524288]{0}', space=vmem, size = 0x80000, scoped, tag = 'input window, operand 7']
    #allocation9 [shape = 's32[2]{0}', space=sflag, size = 0x8, scoped, tag = 'scoped memory for tpu_custom_call.1']
    #allocation10 [shape = 'u8[2048]{0}', space=vmem, size = 0x800, scoped, tag = 'output window, operand 0, single buffered']
    #allocation11 [shape = 'u8[512]{0}', space=smem, size = 0x200, scoped, tag = 'output window, operand 1, single buffered']
    %18 = vsyncpa [#allocation5], 0
    %19 = vsyncpa [#allocation9], 0
    %s20 = scalar_lea.sflag [#allocation9], 1
    %21 = vsyncpa %s20, 0
    %22 = vsyncpa [#allocation6], 0
    %23 = vsyncpa [#allocation7], 0
    loop: start=0, step=1, limit=4
    $region2: #{tpu_custom_call.1} parent=1 // loop_pre_header
      _
    $region3: #{tpu_custom_call.1} parent=1 // loop_header
      %s25 = sphi 0, %s29
      %p26 = scmp.ge.s32.totalorder %s25, 4
      %s33 = sphi 0, %s33
      %s35 = sphi 0, %s33
      %s36 = sphi 0, %s35
      %s50 = sphi 0, %s36
      %s54 = sphi 0, %s54
      %s56 = sphi 0, %s54
      %s57 = sphi 0, %s56
      %s71 = sphi 0, %s57
      %s75 = sphi 0, %s75
      %s77 = sphi 0, %s75
      %s78 = sphi 0, %s77
      %s92 = sphi 0, %s78
      %s96 = sphi 0, %s96
      %s98 = sphi 0, %s96
      %s99 = sphi 0, %s98
      %s113 = sphi 0, %s99
      %s117 = sphi 0, %s117
      %s119 = sphi 0, %s117
      %s120 = sphi 0, %s119
      %s134 = sphi 0, %s120
      %s138 = sphi 0, %s138
      %s140 = sphi 0, %s138
      %s141 = sphi 0, %s140
      %s155 = sphi 0, %s141
      %s161 = sphi 0, %s163
      %s164 = sphi 0, %s161
      %s165 = sphi 0, %s164
      %s181 = sphi 0, %s165
      %s187 = sphi 0, %s189
      %s190 = sphi 0, %s187
      %s191 = sphi 0, %s190
      %s207 = sphi 0, %s191
      %s211 = sphi 0, %s211
      %s213 = sphi 0, %s211
      %s214 = sphi 0, %s213
      %s228 = sphi 0, %s214
      %s232 = sphi 0, %s232
      %s234 = sphi 0, %s232
      %s235 = sphi 0, %s234
      %s249 = sphi 0, %s235
      %s253 = sphi 0, %s253
      %s255 = sphi 0, %s253
      %s256 = sphi 0, %s255
      %s270 = sphi 0, %s256
      %s274 = sphi 0, %s274
      %s276 = sphi 0, %s274
      %s277 = sphi 0, %s276
      %s291 = sphi 0, %s277
      %s295 = sphi 0, %s295
      %s297 = sphi 0, %s295
      %s298 = sphi 0, %s297
      %s312 = sphi 0, %s298
    $region4: #{tpu_custom_call.1} parent=1 // loop_header_branch
      %28 = sbr.rel (%p26) target = $region8
    $region5: #{tpu_custom_call.1} parent=1 // loop_body
      %s30 = ssub.s32 %s25, 1
      %s31 = ssub.s32 %s25, 2
      %s32 = sadd.s32 %s25, 1
      %s34 = sadd.s32 %s33, 1
      %p37 = scmp.eq.s32.totalorder %s25, 1
      %p38 = scmp.ne.s32.totalorder %s33, %s35
      %p39 = scmp.eq.s32.totalorder %s25, 0
      %p40 = por %p38, %p39
      %p41 = scmp.ne.s32.totalorder %s33, %s35
      %p42 = scmp.eq.s32.totalorder %s30, 1
      %p43 = por %p41, %p42
      %p44 = scmp.ne.s32.totalorder %s35, %s36
      %p45 = scmp.eq.s32.totalorder %s30, 0
      %p46 = por %p44, %p45
      %p47 = scmp.ne.s32.totalorder %s35, %s36
      %p48 = scmp.eq.s32.totalorder %s31, 1
      %p49 = por %p47, %p48
      %p51 = scmp.ne.s32.totalorder %s36, %s50
      %p52 = scmp.eq.s32.totalorder %s31, 0
      %p53 = por %p51, %p52
      %s55 = sadd.s32 %s54, 1
      %p58 = scmp.eq.s32.totalorder %s25, 1
      %p59 = scmp.ne.s32.totalorder %s54, %s56
      %p60 = scmp.eq.s32.totalorder %s25, 0
      %p61 = por %p59, %p60
      %p62 = scmp.ne.s32.totalorder %s54, %s56
      %p63 = scmp.eq.s32.totalorder %s30, 1
      %p64 = por %p62, %p63
      %p65 = scmp.ne.s32.totalorder %s56, %s57
      %p66 = scmp.eq.s32.totalorder %s30, 0
      %p67 = por %p65, %p66
      %p68 = scmp.ne.s32.totalorder %s56, %s57
      %p69 = scmp.eq.s32.totalorder %s31, 1
      %p70 = por %p68, %p69
      %p72 = scmp.ne.s32.totalorder %s57, %s71
      %p73 = scmp.eq.s32.totalorder %s31, 0
      %p74 = por %p72, %p73
      %s76 = sadd.s32 %s75, 1
      %p79 = scmp.eq.s32.totalorder %s25, 1
      %p80 = scmp.ne.s32.totalorder %s75, %s77
      %p81 = scmp.eq.s32.totalorder %s25, 0
      %p82 = por %p80, %p81
      %p83 = scmp.ne.s32.totalorder %s75, %s77
      %p84 = scmp.eq.s32.totalorder %s30, 1
      %p85 = por %p83, %p84
      %p86 = scmp.ne.s32.totalorder %s77, %s78
      %p87 = scmp.eq.s32.totalorder %s30, 0
      %p88 = por %p86, %p87
      %p89 = scmp.ne.s32.totalorder %s77, %s78
      %p90 = scmp.eq.s32.totalorder %s31, 1
      %p91 = por %p89, %p90
      %p93 = scmp.ne.s32.totalorder %s78, %s92
      %p94 = scmp.eq.s32.totalorder %s31, 0
      %p95 = por %p93, %p94
      %s97 = sadd.s32 %s96, 1
      %p100 = scmp.eq.s32.totalorder %s25, 1
      %p101 = scmp.ne.s32.totalorder %s96, %s98
      %p102 = scmp.eq.s32.totalorder %s25, 0
      %p103 = por %p101, %p102
      %p104 = scmp.ne.s32.totalorder %s96, %s98
      %p105 = scmp.eq.s32.totalorder %s30, 1
      %p106 = por %p104, %p105
      %p107 = scmp.ne.s32.totalorder %s98, %s99
      %p108 = scmp.eq.s32.totalorder %s30, 0
      %p109 = por %p107, %p108
      %p110 = scmp.ne.s32.totalorder %s98, %s99
      %p111 = scmp.eq.s32.totalorder %s31, 1
      %p112 = por %p110, %p111
      %p114 = scmp.ne.s32.totalorder %s99, %s113
      %p115 = scmp.eq.s32.totalorder %s31, 0
      %p116 = por %p114, %p115
      %s118 = sadd.s32 %s117, 1
      %p121 = scmp.eq.s32.totalorder %s25, 1
      %p122 = scmp.ne.s32.totalorder %s117, %s119
      %p123 = scmp.eq.s32.totalorder %s25, 0
      %p124 = por %p122, %p123
      %p125 = scmp.ne.s32.totalorder %s117, %s119
      %p126 = scmp.eq.s32.totalorder %s30, 1
      %p127 = por %p125, %p126
      %p128 = scmp.ne.s32.totalorder %s119, %s120
      %p129 = scmp.eq.s32.totalorder %s30, 0
      %p130 = por %p128, %p129
      %p131 = scmp.ne.s32.totalorder %s119, %s120
      %p132 = scmp.eq.s32.totalorder %s31, 1
      %p133 = por %p131, %p132
      %p135 = scmp.ne.s32.totalorder %s120, %s134
      %p136 = scmp.eq.s32.totalorder %s31, 0
      %p137 = por %p135, %p136
      %s139 = sadd.s32 %s138, 1
      %p142 = scmp.eq.s32.totalorder %s25, 1
      %p143 = scmp.ne.s32.totalorder %s138, %s140
      %p144 = scmp.eq.s32.totalorder %s25, 0
      %p145 = por %p143, %p144
      %p146 = scmp.ne.s32.totalorder %s138, %s140
      %p147 = scmp.eq.s32.totalorder %s30, 1
      %p148 = por %p146, %p147
      %p149 = scmp.ne.s32.totalorder %s140, %s141
      %p150 = scmp.eq.s32.totalorder %s30, 0
      %p151 = por %p149, %p150
      %p152 = scmp.ne.s32.totalorder %s140, %s141
      %p153 = scmp.eq.s32.totalorder %s31, 1
      %p154 = por %p152, %p153
      %p156 = scmp.ne.s32.totalorder %s141, %s155
      %p157 = scmp.eq.s32.totalorder %s31, 0
      %p158 = por %p156, %p157
      %s159 = ssub.s32 %s25, %s32
      %p160 = scmp.eq.s32.totalorder %s159, 0
      %s162 = sadd.s32 %s161, 1
      %s163 = scalar_select %p160, %s161, %s162
      %p166 = pneg %p160
      %p167 = scmp.eq.s32.totalorder %s25, 1
      %p168 = por %p166, %p167
      %p169 = scmp.ne.s32.totalorder %s161, %s164
      %p170 = scmp.eq.s32.totalorder %s25, 0
      %p171 = por %p169, %p170
      %p172 = scmp.ne.s32.totalorder %s161, %s164
      %p173 = scmp.eq.s32.totalorder %s30, 1
      %p174 = por %p172, %p173
      %p175 = scmp.ne.s32.totalorder %s164, %s165
      %p176 = scmp.eq.s32.totalorder %s30, 0
      %p177 = por %p175, %p176
      %p178 = scmp.ne.s32.totalorder %s164, %s165
      %p179 = scmp.eq.s32.totalorder %s31, 1
      %p180 = por %p178, %p179
      %p182 = scmp.ne.s32.totalorder %s165, %s181
      %p183 = scmp.eq.s32.totalorder %s31, 0
      %p184 = por %p182, %p183
      %s185 = ssub.s32 %s25, %s32
      %p186 = scmp.eq.s32.totalorder %s185, 0
      %s188 = sadd.s32 %s187, 1
      %s189 = scalar_select %p186, %s187, %s188
      %p192 = pneg %p186
      %p193 = scmp.eq.s32.totalorder %s25, 1
      %p194 = por %p192, %p193
      %p195 = scmp.ne.s32.totalorder %s187, %s190
      %p196 = scmp.eq.s32.totalorder %s25, 0
      %p197 = por %p195, %p196
      %p198 = scmp.ne.s32.totalorder %s187, %s190
      %p199 = scmp.eq.s32.totalorder %s30, 1
      %p200 = por %p198, %p199
      %p201 = scmp.ne.s32.totalorder %s190, %s191
      %p202 = scmp.eq.s32.totalorder %s30, 0
      %p203 = por %p201, %p202
      %p204 = scmp.ne.s32.totalorder %s190, %s191
      %p205 = scmp.eq.s32.totalorder %s31, 1
      %p206 = por %p204, %p205
      %p208 = scmp.ne.s32.totalorder %s191, %s207
      %p209 = scmp.eq.s32.totalorder %s31, 0
      %p210 = por %p208, %p209
      %s212 = sadd.s32 %s211, 1
      %p215 = scmp.eq.s32.totalorder %s25, 1
      %p216 = scmp.ne.s32.totalorder %s211, %s213
      %p217 = scmp.eq.s32.totalorder %s25, 0
      %p218 = por %p216, %p217
      %p219 = scmp.ne.s32.totalorder %s211, %s213
      %p220 = scmp.eq.s32.totalorder %s30, 1
      %p221 = por %p219, %p220
      %p222 = scmp.ne.s32.totalorder %s213, %s214
      %p223 = scmp.eq.s32.totalorder %s30, 0
      %p224 = por %p222, %p223
      %p225 = scmp.ne.s32.totalorder %s213, %s214
      %p226 = scmp.eq.s32.totalorder %s31, 1
      %p227 = por %p225, %p226
      %p229 = scmp.ne.s32.totalorder %s214, %s228
      %p230 = scmp.eq.s32.totalorder %s31, 0
      %p231 = por %p229, %p230
      %s233 = sadd.s32 %s232, 1
      %p236 = scmp.eq.s32.totalorder %s25, 1
      %p237 = scmp.ne.s32.totalorder %s232, %s234
      %p238 = scmp.eq.s32.totalorder %s25, 0
      %p239 = por %p237, %p238
      %p240 = scmp.ne.s32.totalorder %s232, %s234
      %p241 = scmp.eq.s32.totalorder %s30, 1
      %p242 = por %p240, %p241
      %p243 = scmp.ne.s32.totalorder %s234, %s235
      %p244 = scmp.eq.s32.totalorder %s30, 0
      %p245 = por %p243, %p244
      %p246 = scmp.ne.s32.totalorder %s234, %s235
      %p247 = scmp.eq.s32.totalorder %s31, 1
      %p248 = por %p246, %p247
      %p250 = scmp.ne.s32.totalorder %s235, %s249
      %p251 = scmp.eq.s32.totalorder %s31, 0
      %p252 = por %p250, %p251
      %s254 = sadd.s32 %s253, 1
      %p257 = scmp.eq.s32.totalorder %s25, 1
      %p258 = scmp.ne.s32.totalorder %s253, %s255
      %p259 = scmp.eq.s32.totalorder %s25, 0
      %p260 = por %p258, %p259
      %p261 = scmp.ne.s32.totalorder %s253, %s255
      %p262 = scmp.eq.s32.totalorder %s30, 1
      %p263 = por %p261, %p262
      %p264 = scmp.ne.s32.totalorder %s255, %s256
      %p265 = scmp.eq.s32.totalorder %s30, 0
      %p266 = por %p264, %p265
      %p267 = scmp.ne.s32.totalorder %s255, %s256
      %p268 = scmp.eq.s32.totalorder %s31, 1
      %p269 = por %p267, %p268
      %p271 = scmp.ne.s32.totalorder %s256, %s270
      %p272 = scmp.eq.s32.totalorder %s31, 0
      %p273 = por %p271, %p272
      %s275 = sadd.s32 %s274, 1
      %p278 = scmp.eq.s32.totalorder %s25, 1
      %p279 = scmp.ne.s32.totalorder %s274, %s276
      %p280 = scmp.eq.s32.totalorder %s25, 0
      %p281 = por %p279, %p280
      %p282 = scmp.ne.s32.totalorder %s274, %s276
      %p283 = scmp.eq.s32.totalorder %s30, 1
      %p284 = por %p282, %p283
      %p285 = scmp.ne.s32.totalorder %s276, %s277
      %p286 = scmp.eq.s32.totalorder %s30, 0
      %p287 = por %p285, %p286
      %p288 = scmp.ne.s32.totalorder %s276, %s277
      %p289 = scmp.eq.s32.totalorder %s31, 1
      %p290 = por %p288, %p289
      %p292 = scmp.ne.s32.totalorder %s277, %s291
      %p293 = scmp.eq.s32.totalorder %s31, 0
      %p294 = por %p292, %p293
      %s296 = sadd.s32 %s295, 1
      %p299 = scmp.eq.s32.totalorder %s25, 1
      %p300 = scmp.ne.s32.totalorder %s295, %s297
      %p301 = scmp.eq.s32.totalorder %s25, 0
      %p302 = por %p300, %p301
      %p303 = scmp.ne.s32.totalorder %s295, %s297
      %p304 = scmp.eq.s32.totalorder %s30, 1
      %p305 = por %p303, %p304
      %p306 = scmp.ne.s32.totalorder %s297, %s298
      %p307 = scmp.eq.s32.totalorder %s30, 0
      %p308 = por %p306, %p307
      %p309 = scmp.ne.s32.totalorder %s297, %s298
      %p310 = scmp.eq.s32.totalorder %s31, 1
      %p311 = por %p309, %p310
      %p313 = scmp.ne.s32.totalorder %s298, %s312
      %p314 = scmp.eq.s32.totalorder %s31, 0
      %p315 = por %p313, %p314
      %p316 = scmp.le.s32.totalorder 1, %s25
      %p317 = scmp.lt.s32.totalorder %s25, 3
      %p318 = pnand %p316, %p317
      %p319 = pneg %p318
      // Predicated region
      $region9: #{tpu_custom_call.1} parent=5 // pred_check
        _
      $region10: #{tpu_custom_call.1} parent=5 // pred_check_branch
        %321 = sbr.rel (%p318) target = $region12
      $region11: #{tpu_custom_call.1} parent=5 // pred_region
        %s322 = ssub.s32 %s25, 1
        // Predicated region
        $region13: #{tpu_custom_call.1} parent=11 // pred_check
          %p323 = pneg %p46
        $region14: #{tpu_custom_call.1} parent=11 // pred_check_branch
          %325 = sbr.rel (%p323) target = $region16
        $region15: #{tpu_custom_call.1} parent=11 // pred_region
          _
        $region16: #{tpu_custom_call.1} parent=11 // pred_fallthru
          _
        // Predicated region
        $region17: #{tpu_custom_call.1} parent=11 // pred_check
          %p326 = pneg %p67
        $region18: #{tpu_custom_call.1} parent=11 // pred_check_branch
          %328 = sbr.rel (%p326) target = $region20
        $region19: #{tpu_custom_call.1} parent=11 // pred_region
          _
        $region20: #{tpu_custom_call.1} parent=11 // pred_fallthru
          _
        // Predicated region
        $region21: #{tpu_custom_call.1} parent=11 // pred_check
          %p329 = pneg %p88
        $region22: #{tpu_custom_call.1} parent=11 // pred_check_branch
          %331 = sbr.rel (%p329) target = $region24
        $region23: #{tpu_custom_call.1} parent=11 // pred_region
          _
        $region24: #{tpu_custom_call.1} parent=11 // pred_fallthru
          _
        // Predicated region
        $region25: #{tpu_custom_call.1} parent=11 // pred_check
          %p332 = pneg %p109
        $region26: #{tpu_custom_call.1} parent=11 // pred_check_branch
          %334 = sbr.rel (%p332) target = $region28
        $region27: #{tpu_custom_call.1} parent=11 // pred_region
          %s336 = ssub.s32 32, 32
          %337 = vsyncadd [#allocation5], %s336
          %s339 = sshll.u32 [#allocation4], 4
          %s340 = int_to_ptr.vmem [resolvable:$true] %s339
          %342 = dma.hbm_to_vmem [thread:$0]  %s3, 32, %s340, [#allocation5]
        $region28: #{tpu_custom_call.1} parent=11 // pred_fallthru
          _
        // Predicated region
        $region29: #{tpu_custom_call.1} parent=11 // pred_check
          %p343 = pneg %p130
        $region30: #{tpu_custom_call.1} parent=11 // pred_check_branch
          %345 = sbr.rel (%p343) target = $region32
        $region31: #{tpu_custom_call.1} parent=11 // pred_region
          _
        $region32: #{tpu_custom_call.1} parent=11 // pred_fallthru
          _
        // Predicated region
        $region33: #{tpu_custom_call.1} parent=11 // pred_check
          %p346 = pneg %p151
        $region34: #{tpu_custom_call.1} parent=11 // pred_check_branch
          %348 = sbr.rel (%p346) target = $region36
        $region35: #{tpu_custom_call.1} parent=11 // pred_region
          _
        $region36: #{tpu_custom_call.1} parent=11 // pred_fallthru
          _
        // Predicated region
        $region37: #{tpu_custom_call.1} parent=11 // pred_check
          %p349 = pneg %p224
        $region38: #{tpu_custom_call.1} parent=11 // pred_check_branch
          %351 = sbr.rel (%p349) target = $region40
        $region39: #{tpu_custom_call.1} parent=11 // pred_region
          _
        $region40: #{tpu_custom_call.1} parent=11 // pred_fallthru
          _
        // Predicated region
        $region41: #{tpu_custom_call.1} parent=11 // pred_check
          %p352 = pneg %p245
        $region42: #{tpu_custom_call.1} parent=11 // pred_check_branch
          %354 = sbr.rel (%p352) target = $region44
        $region43: #{tpu_custom_call.1} parent=11 // pred_region
          _
        $region44: #{tpu_custom_call.1} parent=11 // pred_fallthru
          _
        // Predicated region
        $region45: #{tpu_custom_call.1} parent=11 // pred_check
          %p355 = pneg %p266
        $region46: #{tpu_custom_call.1} parent=11 // pred_check_branch
          %357 = sbr.rel (%p355) target = $region48
        $region47: #{tpu_custom_call.1} parent=11 // pred_region
          _
        $region48: #{tpu_custom_call.1} parent=11 // pred_fallthru
          _
      $region12: #{tpu_custom_call.1} parent=5 // pred_fallthru
        _
      %p358 = scmp.lt.s32.totalorder %s25, 2
      // Predicated region
      $region49: #{tpu_custom_call.1} parent=5 // pred_check
        %p359 = pneg %p358
      $region50: #{tpu_custom_call.1} parent=5 // pred_check_branch
        %361 = sbr.rel (%p359) target = $region52
      $region51: #{tpu_custom_call.1} parent=5 // pred_region
        // Predicated region
        $region53: #{tpu_custom_call.1} parent=51 // pred_check
          %p362 = pneg %p171
        $region54: #{tpu_custom_call.1} parent=51 // pred_check_branch
          %364 = sbr.rel (%p362) target = $region56
        $region55: #{tpu_custom_call.1} parent=51 // pred_region
          %p365 = scmp.lt.s32.totalorder %s25, 1
          %s366 = scalar_select %p365, %s25, 1
          %s367 = smul.addr %s366, 2
          %s368 = smul.addr %s367, 2
          %s369 = scalar_lea.vmem %s6, %s368
        $region56: #{tpu_custom_call.1} parent=51 // pred_fallthru
          _
        // Predicated region
        $region57: #{tpu_custom_call.1} parent=51 // pred_check
          %p370 = pneg %p197
        $region58: #{tpu_custom_call.1} parent=51 // pred_check_branch
          %372 = sbr.rel (%p370) target = $region60
        $region59: #{tpu_custom_call.1} parent=51 // pred_region
          %s373 = sand.u32 %s187, 1
          %s374 = scalar_lea.sflag [#allocation9], %s373
          %s375 = sand.u32 %s187, 1
          %s376 = smul.addr %s375, 512
          %s377 = scalar_lea.vmem [#allocation8], %s376
          %s379 = ssub.s32 8192, 8192
          %380 = vsyncadd %s374, %s379
          %s381 = smul.addr %s25, 64
          %s382 = smul.addr %s381, 128
          %s383 = scalar_lea.hbm %s7, %s382
          %s384 = sshll.u32 %s377, 4
          %s385 = int_to_ptr.vmem [resolvable:$true] %s384
          %390 = dma.hbm_to_vmem [thread:$0]  %s383, 8192, %s385, %s374, 256, 256, 16
        $region60: #{tpu_custom_call.1} parent=51 // pred_fallthru
          _
      $region52: #{tpu_custom_call.1} parent=5 // pred_fallthru
        _
      %p391 = scmp.le.s32.totalorder 1, %s25
      %p392 = scmp.lt.s32.totalorder %s25, 3
      %p393 = pnand %p391, %p392
      %p394 = pneg %p393
      // Predicated region
      $region61: #{tpu_custom_call.1} parent=5 // pred_check
        _
      $region62: #{tpu_custom_call.1} parent=5 // pred_check_branch
        %396 = sbr.rel (%p393) target = $region64
      $region63: #{tpu_custom_call.1} parent=5 // pred_region
        %s397 = ssub.s32 %s25, 1
        // Predicated region
        $region65: #{tpu_custom_call.1} parent=63 // pred_check
          %p398 = pneg %p109
        $region66: #{tpu_custom_call.1} parent=63 // pred_check_branch
          %400 = sbr.rel (%p398) target = $region68
        $region67: #{tpu_custom_call.1} parent=63 // pred_region
          %401 = dma.done [#allocation5], 32
        $region68: #{tpu_custom_call.1} parent=63 // pred_fallthru
          _
        %s402 = sand.u32 %s190, 1
        %s403 = scalar_lea.sflag [#allocation9], %s402
        %s404 = sand.u32 %s190, 1
        %s405 = smul.addr %s404, 512
        %s406 = scalar_lea.vmem [#allocation8], %s405
        // Predicated region
        $region69: #{tpu_custom_call.1} parent=63 // pred_check
          %p407 = pneg %p203
        $region70: #{tpu_custom_call.1} parent=63 // pred_check_branch
          %409 = sbr.rel (%p407) target = $region72
        $region71: #{tpu_custom_call.1} parent=63 // pred_region
          %410 = dma.done %s403, 8192
        $region72: #{tpu_custom_call.1} parent=63 // pred_fallthru
          _
        %p411 = pneg %p46
        %p412 = pneg %p43
        %p413 = pneg %p67
        %p414 = pneg %p64
        %p415 = pneg %p88
        %p416 = pneg %p85
        %p417 = pneg %p109
        %p418 = pneg %p106
        %p419 = pneg %p130
        %p420 = pneg %p127
        %p421 = pneg %p151
        %p422 = pneg %p148
        %p423 = scmp.lt.s32.totalorder %s30, 1
        %s424 = scalar_select %p423, %s30, 1
        %s425 = smul.addr %s424, 2
        %s426 = smul.addr %s425, 2
        %s427 = scalar_lea.vmem %s6, %s426
        %p428 = pneg %p177
        %p429 = pneg %p174
        %s430 = sand.u32 %s190, 1
        %s431 = scalar_lea.sflag [#allocation9], %s430
        %s432 = sand.u32 %s190, 1
        %s433 = smul.addr %s432, 512
        %s434 = scalar_lea.vmem [#allocation8], %s433
        %p435 = pneg %p203
        %p436 = pneg %p200
        %p437 = pneg %p224
        %p438 = pneg %p221
        %p439 = pneg %p245
        %p440 = pneg %p242
        %p441 = pneg %p266
        %p442 = pneg %p263
        %p443 = pneg %p287
        %p444 = pneg %p284
        %p445 = pneg %p308
        %p446 = pneg %p305
        %p447 = scmp.lt.s32.totalorder %s30, 1
        %s448 = scalar_select %p447, %s30, 1
        %s449 = smul.addr %s448, 2
        %s450 = smul.addr %s449, 2
        %s451 = scalar_lea.vmem %s6, %s450
        %p452 = scmp.eq.s32.totalorder %s30, 0
        // Predicated region
        $region73: #{tpu_custom_call.1} parent=63 // pred_check
          %p453 = pneg %p452
        $region74: #{tpu_custom_call.1} parent=63 // pred_check_branch
          %455 = sbr.rel (%p453) target = $region76
        $region75: #{tpu_custom_call.1} parent=63 // pred_region
          %456 = vst [vmem:[#allocation2] sm:$0xf] 0.0
          %457 = vst [vmem:[#allocation3] sm:$0xf] 0.0
        $region76: #{tpu_custom_call.1} parent=63 // pred_fallthru
          _
        %v458 = vld [vmem:[%s451] sm:$0xf]
        %v459 = vld [vmem:[%s406] sm:$0xff]
        %v460 = vld [vmem:[%s406 + $0x8] sm:$0xff]
        %v461 = vld [vmem:[%s406 + $0x10] sm:$0xff]
        %v462 = vld [vmem:[%s406 + $0x18] sm:$0xff]
        %v463 = vld [vmem:[%s406 + $0x20] sm:$0xff]
        %v464 = vld [vmem:[%s406 + $0x28] sm:$0xff]
        %v465 = vld [vmem:[%s406 + $0x30] sm:$0xff]
        %v466 = vld [vmem:[%s406 + $0x38] sm:$0xff]
        %v467 = vld [vmem:[%s406 + $0x40] sm:$0xff]
        %v468 = vld [vmem:[%s406 + $0x48] sm:$0xff]
        %v469 = vld [vmem:[%s406 + $0x50] sm:$0xff]
        %v470 = vld [vmem:[%s406 + $0x58] sm:$0xff]
        %v471 = vld [vmem:[%s406 + $0x60] sm:$0xff]
        %v472 = vld [vmem:[%s406 + $0x68] sm:$0xff]
        %v473 = vld [vmem:[%s406 + $0x70] sm:$0xff]
        %v474 = vld [vmem:[%s406 + $0x78] sm:$0xff]
        %v475 = vld [vmem:[%s406 + $0x80] sm:$0xff]
        %v476 = vld [vmem:[%s406 + $0x88] sm:$0xff]
        %v477 = vld [vmem:[%s406 + $0x90] sm:$0xff]
        %v478 = vld [vmem:[%s406 + $0x98] sm:$0xff]
        %v479 = vld [vmem:[%s406 + $0xa0] sm:$0xff]
        %v480 = vld [vmem:[%s406 + $0xa8] sm:$0xff]
        %v481 = vld [vmem:[%s406 + $0xb0] sm:$0xff]
        %v482 = vld [vmem:[%s406 + $0xb8] sm:$0xff]
        %v483 = vld [vmem:[%s406 + $0xc0] sm:$0xff]
        %v484 = vld [vmem:[%s406 + $0xc8] sm:$0xff]
        %v485 = vld [vmem:[%s406 + $0xd0] sm:$0xff]
        %v486 = vld [vmem:[%s406 + $0xd8] sm:$0xff]
        %v487 = vld [vmem:[%s406 + $0xe0] sm:$0xff]
        %v488 = vld [vmem:[%s406 + $0xe8] sm:$0xff]
        %v489 = vld [vmem:[%s406 + $0xf0] sm:$0xff]
        %v490 = vld [vmem:[%s406 + $0xf8] sm:$0xff]
        %v491 = vld [vmem:[%s406 + $0x100] sm:$0xff]
        %v492 = vld [vmem:[%s406 + $0x108] sm:$0xff]
        %v493 = vld [vmem:[%s406 + $0x110] sm:$0xff]
        %v494 = vld [vmem:[%s406 + $0x118] sm:$0xff]
        %v495 = vld [vmem:[%s406 + $0x120] sm:$0xff]
        %v496 = vld [vmem:[%s406 + $0x128] sm:$0xff]
        %v497 = vld [vmem:[%s406 + $0x130] sm:$0xff]
        %v498 = vld [vmem:[%s406 + $0x138] sm:$0xff]
        %v499 = vld [vmem:[%s406 + $0x140] sm:$0xff]
        %v500 = vld [vmem:[%s406 + $0x148] sm:$0xff]
        %v501 = vld [vmem:[%s406 + $0x150] sm:$0xff]
        %v502 = vld [vmem:[%s406 + $0x158] sm:$0xff]
        %v503 = vld [vmem:[%s406 + $0x160] sm:$0xff]
        %v504 = vld [vmem:[%s406 + $0x168] sm:$0xff]
        %v505 = vld [vmem:[%s406 + $0x170] sm:$0xff]
        %v506 = vld [vmem:[%s406 + $0x178] sm:$0xff]
        %v507 = vld [vmem:[%s406 + $0x180] sm:$0xff]
        %v508 = vld [vmem:[%s406 + $0x188] sm:$0xff]
        %v509 = vld [vmem:[%s406 + $0x190] sm:$0xff]
        %v510 = vld [vmem:[%s406 + $0x198] sm:$0xff]
        %v511 = vld [vmem:[%s406 + $0x1a0] sm:$0xff]
        %v512 = vld [vmem:[%s406 + $0x1a8] sm:$0xff]
        %v513 = vld [vmem:[%s406 + $0x1b0] sm:$0xff]
        %v514 = vld [vmem:[%s406 + $0x1b8] sm:$0xff]
        %v515 = vld [vmem:[%s406 + $0x1c0] sm:$0xff]
        %v516 = vld [vmem:[%s406 + $0x1c8] sm:$0xff]
        %v517 = vld [vmem:[%s406 + $0x1d0] sm:$0xff]
        %v518 = vld [vmem:[%s406 + $0x1d8] sm:$0xff]
        %v519 = vld [vmem:[%s406 + $0x1e0] sm:$0xff]
        %v520 = vld [vmem:[%s406 + $0x1e8] sm:$0xff]
        %v521 = vld [vmem:[%s406 + $0x1f0] sm:$0xff]
        %v522 = vld [vmem:[%s406 + $0x1f8] sm:$0xff]
        %v525 = vunpack.c.l.s4 1983009808
        %v526 = vunpack.c.0.s8 %v525
        %v527 = vlaneseq
        %v528 = vshrl.u32 %v527, 7
        %v529 = vsub.s32 %v526, %v528
        %v530 = vrot.slane %v458, %v529
        %v531 = vcombine.high %v530, %v530
        %534 = vmatprep.subr.mxu0 %v460
        %535 = vmatpush1.msra.mxu0 %v459
        %536 = vmatprep.subr.mxu0 %v462
        %537 = vmatpush1.msra.mxu0 %v461
        %538 = vmatprep.subr.mxu0 %v464
        %539 = vmatpush1.msra.mxu0 %v463
        %540 = vmatprep.subr.mxu0 %v466
        %541 = vmatpush1.msra.mxu0 %v465
        %542 = vmatprep.subr.mxu0 %v468
        %543 = vmatpush1.msra.mxu0 %v467
        %544 = vmatprep.subr.mxu0 %v470
        %545 = vmatpush1.msra.mxu0 %v469
        %546 = vmatprep.subr.mxu0 %v472
        %547 = vmatpush1.msra.mxu0 %v471
        %548 = vmatprep.subr.mxu0 %v474
        %549 = vmatpush1.msra.mxu0 %v473
        %550 = vmatprep.subr.mxu0 %v476
        %551 = vmatpush1.msra.mxu0 %v475
        %552 = vmatprep.subr.mxu0 %v478
        %553 = vmatpush1.msra.mxu0 %v477
        %554 = vmatprep.subr.mxu0 %v480
        %555 = vmatpush1.msra.mxu0 %v479
        %556 = vmatprep.subr.mxu0 %v482
        %557 = vmatpush1.msra.mxu0 %v481
        %558 = vmatprep.subr.mxu0 %v484
        %559 = vmatpush1.msra.mxu0 %v483
        %560 = vmatprep.subr.mxu0 %v486
        %561 = vmatpush1.msra.mxu0 %v485
        %562 = vmatprep.subr.mxu0 %v488
        %563 = vmatpush1.msra.mxu0 %v487
        %564 = vmatprep.subr.mxu0 %v490
        %565 = vmatpush1.msra.mxu0 %v489
        %566 = vmatprep.subr.mxu0 %v492
        %567 = vmatpush1.msra.mxu0 %v491
        %568 = vmatprep.subr.mxu0 %v494
        %569 = vmatpush1.msra.mxu0 %v493
        %570 = vmatprep.subr.mxu0 %v496
        %571 = vmatpush1.msra.mxu0 %v495
        %572 = vmatprep.subr.mxu0 %v498
        %573 = vmatpush1.msra.mxu0 %v497
        %574 = vmatprep.subr.mxu0 %v500
        %575 = vmatpush1.msra.mxu0 %v499
        %576 = vmatprep.subr.mxu0 %v502
        %577 = vmatpush1.msra.mxu0 %v501
        %578 = vmatprep.subr.mxu0 %v504
        %579 = vmatpush1.msra.mxu0 %v503
        %580 = vmatprep.subr.mxu0 %v506
        %581 = vmatpush1.msra.mxu0 %v505
        %582 = vmatprep.subr.mxu0 %v508
        %583 = vmatpush1.msra.mxu0 %v507
        %584 = vmatprep.subr.mxu0 %v510
        %585 = vmatpush1.msra.mxu0 %v509
        %586 = vmatprep.subr.mxu0 %v512
        %587 = vmatpush1.msra.mxu0 %v511
        %588 = vmatprep.subr.mxu0 %v514
        %589 = vmatpush1.msra.mxu0 %v513
        %590 = vmatprep.subr.mxu0 %v516
        %591 = vmatpush1.msra.mxu0 %v515
        %592 = vmatprep.subr.mxu0 %v518
        %593 = vmatpush1.msra.mxu0 %v517
        %594 = vmatprep.subr.mxu0 %v520
        %595 = vmatpush1.msra.mxu0 %v519
        %596 = vmatprep.subr.mxu0 %v522
        %597 = vmatpush1.msra.mxu0 %v521
        %598 = vmatprep.mubr.f32.mxu0 %v531
        %599 = vmatmul.mubr.f32.gmra.mrb[0].mxu0 %v530
        %v600 = vpop.f32.mrb[0].mxu0
        %v601 = vadd.f32 0.0, %v600
        %v602 = vpop.f32.mrb[0].mxu0
        %v603 = vadd.f32 0.0, %v602
        %604 = vdwg.mxu0
        %v605 = vld [vmem:[#allocation2] sm:$0xf]
        %v606 = vlog2.pop %v601
        %v607 = vmul.f32 %v606, 0.6931472
        %v608 = vlog2.pop %v603
        %v609 = vmul.f32 %v608, 0.6931472
        %v610 = vmax.f32 %v607, -100.0
        %v611 = vmax.f32 %v609, -100.0
        %v614 = vcombine.low %v610, %v611
        %v616 = vunpack.c.l.s4 1983009808
        %v617 = vunpack.c.0.s8 %v616
        %v618 = vlaneseq
        %v619 = vshrl.u32 %v618, 7
        %v620 = vsub.s32 %v617, %v619
        %v621 = vrot.slane %v614, %v620
        %v623 = vadd.f32 %v605, %v621
        %624 = vst [vmem:[#allocation2] sm:$0xf] %v623
        %v625 = vld [vmem:[#allocation3] sm:$0xf]
        %v626 = vsub.f32 1.0, %v601
        %v627 = vsub.f32 1.0, %v603
        %v628 = vlog2.pop %v626
        %v629 = vmul.f32 %v628, 0.6931472
        %v630 = vlog2.pop %v627
        %v631 = vmul.f32 %v630, 0.6931472
        %v632 = vmax.f32 %v629, -100.0
        %v633 = vmax.f32 %v631, -100.0
        %v636 = vcombine.low %v632, %v633
        %v638 = vunpack.c.l.s4 1983009808
        %v639 = vunpack.c.0.s8 %v638
        %v640 = vlaneseq
        %v641 = vshrl.u32 %v640, 7
        %v642 = vsub.s32 %v639, %v641
        %v643 = vrot.slane %v636, %v642
        %v645 = vadd.f32 %v625, %v643
        %646 = vst [vmem:[#allocation3] sm:$0xf] %v645
        %p647 = scmp.eq.s32.totalorder %s30, 1
        // Predicated region
        $region77: #{tpu_custom_call.1} parent=63 // pred_check
          %p648 = pneg %p647
        $region78: #{tpu_custom_call.1} parent=63 // pred_check_branch
          %650 = sbr.rel (%p648) target = $region80
        $region79: #{tpu_custom_call.1} parent=63 // pred_region
          %v651 = vld [vmem:[%s0] sm:$0x3]
          %s652 = scalar_lea.vmem %s0, 2
          %v653 = vld [vmem:[%s652] sm:$0x3]
          %s654 = scalar_lea.vmem %s0, 4
          %v655 = vld [vmem:[%s654] sm:$0x3]
          %v656 = vmul.f32 %v655, 16.0
          %s657 = scalar_lea.vmem %s0, 6
          %v658 = vld [vmem:[%s657] sm:$0x3]
          %v659 = vmul.f32 %v658, 16.0
          %v660 = vld [vmem:[%s2] sm:$0x3]
          %v661 = vld [vmem:[#allocation4] sm:$0x3]
          %v663 = vlaneseq
          %v664 = vshrl.u32 %v663, 7
          %v665 = vsub.s32 0, %v664
          %v666 = vrot.slane %v660, %v665
          %v667 = vlaneseq
          %v668 = vshrl.u32 %v667, 7
          %v669 = vsub.s32 1, %v668
          %v670 = vrot.slane %v660, %v669
          %674 = vset.pattern.permute.xlu0 0
          %675 = vperm.xlu0 %674, %v651
          %v676 = vpop.permute.xlu0 %675
          %v678 = vsub.f32 %v666, %v676
          %v679 = vsub.f32 %v670, %v676
          %v680 = vmul.f32 %v678, %v678
          %v681 = vmul.f32 %v679, %v679
          %v683 = vlaneseq
          %v684 = vshrl.u32 %v683, 7
          %v685 = vsub.s32 0, %v684
          %v686 = vrot.slane %v661, %v685
          %v687 = vlaneseq
          %v688 = vshrl.u32 %v687, 7
          %v689 = vsub.s32 1, %v688
          %v690 = vrot.slane %v661, %v689
          %694 = vset.pattern.permute.xlu0 0
          %695 = vperm.xlu0 %694, %v653
          %v696 = vpop.permute.xlu0 %695
          %v698 = vsub.f32 %v686, %v696
          %v699 = vsub.f32 %v690, %v696
          %v700 = vmul.f32 %v698, %v698
          %v701 = vmul.f32 %v699, %v699
          %v702 = vadd.f32 %v680, %v700
          %v703 = vadd.f32 %v681, %v701
          %v704 = vsub.f32 0.0, %v702
          %v705 = vsub.f32 0.0, %v703
          %v706 = vmul.f32 %v704, 200.0
          %v707 = vmul.f32 %v705, 200.0
          %v708 = vmul.f32 %v706, 1.442695
          %v709 = vpow.pop %v708
          %v710 = vmul.f32 %v707, 1.442695
          %v711 = vpow.pop %v710
          %v714 = vcombine.low %v709, %v711
          %v716 = vunpack.c.l.s4 1983009808
          %v717 = vunpack.c.0.s8 %v716
          %v718 = vlaneseq
          %v719 = vshrl.u32 %v718, 7
          %v720 = vsub.s32 %v717, %v719
          %v721 = vrot.slane %v714, %v720
          %723 = vst [vmem:[#allocation10] sm:$0xf] %v721
          %v724 = vld [vmem:[%s4] sm:$0xf]
          %v725 = vlog2.pop %v724
          %v726 = vmul.f32 %v725, 0.6931472
          %v727 = vmax.f32 %v726, -100.0
          %v728 = vsub.f32 1.0, %v724
          %v729 = vlog2.pop %v728
          %v730 = vmul.f32 %v729, 0.6931472
          %v731 = vmax.f32 %v730, -100.0
          %v734 = vunpack.c.l.s4 1983009808
          %v735 = vunpack.c.0.s8 %v734
          %v736 = vlaneseq
          %v737 = vshrl.u32 %v736, 7
          %v738 = vsub.s32 %v735, %v737
          %v739 = vrot.slane %v727, %v738
          %v740 = vcombine.high %v739, %v739
          %v743 = vmul.f32 %v709, %v739
          %v744 = vmul.f32 %v711, %v740
          %v745 = vsub.f32 1.0, %v709
          %v746 = vsub.f32 1.0, %v711
          %v749 = vunpack.c.l.s4 1983009808
          %v750 = vunpack.c.0.s8 %v749
          %v751 = vlaneseq
          %v752 = vshrl.u32 %v751, 7
          %v753 = vsub.s32 %v750, %v752
          %v754 = vrot.slane %v731, %v753
          %v755 = vcombine.high %v754, %v754
          %v758 = vmul.f32 %v745, %v754
          %v759 = vmul.f32 %v746, %v755
          %v760 = vadd.f32 %v743, %v758
          %v761 = vadd.f32 %v744, %v759
          %v762 = vsub.f32 0.0, %v760
          %v763 = vsub.f32 0.0, %v761
          %vm764 = vcmask 1041408
          %v765 = vsel %vm764, %v762, 0.0
          %v766 = vsel %vm764, %v763, 0.0
          %v767 = vadd.f32 %v765, %v766
          %768 = vadd.xlane.f32.xlu0 %v767
          %v769 = vpop.xlane.xlu0 %768
          %v770 = vrot.slane %v769, 4
          %v771 = vadd.f32 %v769, %v770
          %v772 = vrot.slane %v771, 2
          %v773 = vadd.f32 %v771, %v772
          %v774 = vrot.slane %v773, 1
          %v775 = vadd.f32 %v773, %v774
          %s776 = vtos %v775
          %v777 = vld [vmem:[%s5] sm:$0xf]
          %779 = vset.pattern.permute.xlu0 0
          %780 = vperm.xlu0 %779, %v656
          %v781 = vpop.permute.xlu0 %780
          %v783 = vunpack.c.l.s4 269488144
          %v784 = vunpack.c.0.s8 %v783
          %v785 = vlaneseq
          %v786 = vshrl.u32 %v785, 7
          %v787 = vsub.s32 %v784, %v786
          %v788 = vrot.slane %v781, %v787
          %v790 = vsub.f32 %v777, %v788
          %v791 = vmul.f32 %v790, %v721
          %s792 = scalar_lea.vmem %s5, 4
          %v793 = vld [vmem:[%s792] sm:$0xf]
          %795 = vset.pattern.permute.xlu0 0
          %796 = vperm.xlu0 %795, %v659
          %v797 = vpop.permute.xlu0 %796
          %v799 = vunpack.c.l.s4 269488144
          %v800 = vunpack.c.0.s8 %v799
          %v801 = vlaneseq
          %v802 = vshrl.u32 %v801, 7
          %v803 = vsub.s32 %v800, %v802
          %v804 = vrot.slane %v797, %v803
          %v806 = vsub.f32 %v793, %v804
          %v807 = vmul.f32 %v806, %v721
          %v808 = vand.u32 2147483647, %v791
          %vm809 = vcmp.lt.f32.partialorder %v808, 1.0
          %v810 = vmul.f32 %v791, 0.5
          %v811 = vmul.f32 %v810, %v791
          %v812 = vsub.f32 %v808, 0.5
          %v813 = vsel %vm809, %v811, %v812
          %v814 = vand.u32 2147483647, %v807
          %vm815 = vcmp.lt.f32.partialorder %v814, 1.0
          %v816 = vmul.f32 %v807, 0.5
          %v817 = vmul.f32 %v816, %v807
          %v818 = vsub.f32 %v814, 0.5
          %v819 = vsel %vm815, %v817, %v818
          %v820 = vadd.f32 %v813, %v819
          %v823 = vunpack.c.l.s4 1983009808
          %v824 = vunpack.c.0.s8 %v823
          %v825 = vlaneseq
          %v826 = vshrl.u32 %v825, 7
          %v827 = vsub.s32 %v824, %v826
          %v828 = vrot.slane %v820, %v827
          %v829 = vcombine.high %v828, %v828
          %v832 = vsel %vm764, %v828, 0.0
          %v833 = vsel %vm764, %v829, 0.0
          %v834 = vadd.f32 %v832, %v833
          %835 = vadd.xlane.f32.xlu0 %v834
          %v836 = vpop.xlane.xlu0 %835
          %v837 = vrot.slane %v836, 4
          %v838 = vadd.f32 %v836, %v837
          %v839 = vrot.slane %v838, 2
          %v840 = vadd.f32 %v838, %v839
          %v841 = vrot.slane %v840, 1
          %v842 = vadd.f32 %v840, %v841
          %s843 = vtos %v842
          %v844 = vld [vmem:[#allocation2] sm:$0xf]
          %v847 = vunpack.c.l.s4 1983009808
          %v848 = vunpack.c.0.s8 %v847
          %v849 = vlaneseq
          %v850 = vshrl.u32 %v849, 7
          %v851 = vsub.s32 %v848, %v850
          %v852 = vrot.slane %v844, %v851
          %v853 = vcombine.high %v852, %v852
          %v856 = vmul.f32 %v709, %v852
          %v857 = vmul.f32 %v711, %v853
          %v858 = vld [vmem:[#allocation3] sm:$0xf]
          %v861 = vunpack.c.l.s4 1983009808
          %v862 = vunpack.c.0.s8 %v861
          %v863 = vlaneseq
          %v864 = vshrl.u32 %v863, 7
          %v865 = vsub.s32 %v862, %v864
          %v866 = vrot.slane %v858, %v865
          %v867 = vcombine.high %v866, %v866
          %v870 = vmul.f32 %v745, %v866
          %v871 = vmul.f32 %v746, %v867
          %v872 = vadd.f32 %v856, %v870
          %v873 = vadd.f32 %v857, %v871
          %v874 = vsel %vm764, %v872, 0.0
          %v875 = vsel %vm764, %v873, 0.0
          %v876 = vadd.f32 %v874, %v875
          %877 = vadd.xlane.f32.xlu0 %v876
          %v878 = vpop.xlane.xlu0 %877
          %v879 = vrot.slane %v878, 4
          %v880 = vadd.f32 %v878, %v879
          %v881 = vrot.slane %v880, 2
          %v882 = vadd.f32 %v880, %v881
          %v883 = vrot.slane %v882, 1
          %v884 = vadd.f32 %v882, %v883
          %s885 = vtos %v884
          %s886 = ssub.f32 0.0, %s885
          %v887 = vlaneseq
          %v888 = vand.u32 %v887, 127
          %v889 = vcvt.s32.f32 %v888
          %v890 = vld [vmem:[%s1] sm:$0x3]
          %s891 = scalar_lea.vmem %s1, 2
          %v892 = vld [vmem:[%s891] sm:$0x3]
          %894 = vset.pattern.permute.xlu0 0
          %895 = vperm.xlu0 %894, %v890
          %v896 = vpop.permute.xlu0 %895
          %vm898 = vcmp.ge.f32.partialorder %v889, %v896
          %900 = vset.pattern.permute.xlu0 0
          %901 = vperm.xlu0 %900, %v892
          %v902 = vpop.permute.xlu0 %901
          %vm904 = vcmp.le.f32.partialorder %v889, %v902
          %vm905 = vmand %vm898, %vm904
          %v906 = vsel %vm905, 1, 0
          %v907 = vcvt.s32.f32 %v906
          %v908 = vld [vmem:[%s8] sm:$0x3]
          %s909 = scalar_lea.vmem %s8, 2
          %v910 = vld [vmem:[%s909] sm:$0x3]
          %v911 = vsub.f32 %v889, %v896
          %v912 = vmul.f32 %v911, %v907
          %v913 = vsub.f32 %v902, %v889
          %v914 = vmul.f32 %v913, %v907
          %v915 = vmul.f32 %v908, %v907
          %v916 = vsub.f32 %v915, %v912
          %v917 = vand.u32 2147483647, %v916
          %vm918 = vcmp.lt.f32.partialorder %v917, 1.0
          %v919 = vmul.f32 %v916, 0.5
          %v920 = vmul.f32 %v919, %v916
          %v921 = vsub.f32 %v917, 0.5
          %v922 = vsel %vm918, %v920, %v921
          %v923 = vmul.f32 %v910, %v907
          %v924 = vsub.f32 %v923, %v914
          %v925 = vand.u32 2147483647, %v924
          %vm926 = vcmp.lt.f32.partialorder %v925, 1.0
          %v927 = vmul.f32 %v924, 0.5
          %v928 = vmul.f32 %v927, %v924
          %v929 = vsub.f32 %v925, 0.5
          %v930 = vsel %vm926, %v928, %v929
          %v931 = vadd.f32 %v922, %v930
          %vm932 = vcmask 58368
          %v933 = vsel %vm932, %v931, 0.0
          %934 = vadd.xlane.f32.xlu0 %v933
          %v935 = vpop.xlane.xlu0 %934
          %v936 = vrot.slane %v935, 4
          %v937 = vadd.f32 %v935, %v936
          %v938 = vrot.slane %v937, 2
          %v939 = vadd.f32 %v937, %v938
          %v940 = vrot.slane %v939, 1
          %v941 = vadd.f32 %v939, %v940
          %s942 = vtos %v941
          %v943 = vld [vmem:[%s9] sm:$0x3]
          %v944 = vlog2.pop %v943
          %v945 = vmul.f32 %v944, 0.6931472
          %v946 = vmax.f32 %v945, -100.0
          %v947 = vsub.f32 1.0, %v943
          %v948 = vlog2.pop %v947
          %v949 = vmul.f32 %v948, 0.6931472
          %v950 = vmax.f32 %v949, -100.0
          %v951 = vmul.f32 %v907, %v946
          %v952 = vsub.f32 1.0, %v907
          %v953 = vmul.f32 %v952, %v950
          %v954 = vadd.f32 %v951, %v953
          %v955 = vsub.f32 0.0, %v954
          %v956 = vsel %vm932, %v955, 0.0
          %957 = vadd.xlane.f32.xlu0 %v956
          %v958 = vpop.xlane.xlu0 %957
          %v959 = vrot.slane %v958, 4
          %v960 = vadd.f32 %v958, %v959
          %v961 = vrot.slane %v960, 2
          %v962 = vadd.f32 %v960, %v961
          %v963 = vrot.slane %v962, 1
          %v964 = vadd.f32 %v962, %v963
          %s965 = vtos %v964
          %v966 = vsub.f32 %v889, %v908
          %v967 = vmul.f32 %v966, 0.125
          %v968 = vmax.f32 %v967, 0.0
          %v969 = vmin.f32 %v968, 1.0
          %v970 = vadd.f32 %v889, %v910
          %v971 = vmul.f32 %v970, 0.125
          %v972 = vmax.f32 %v971, 0.0
          %v973 = vmin.f32 %v972, 1.0
          %v974 = vmul.f32 %v890, 0.125
          %v975 = vmul.f32 %v892, 0.125
          %977 = vset.pattern.permute.xlu0 0
          %978 = vperm.xlu0 %977, %v975
          %v979 = vpop.permute.xlu0 %978
          %v981 = vmin.f32 %v973, %v979
          %983 = vset.pattern.permute.xlu0 0
          %984 = vperm.xlu0 %983, %v974
          %v985 = vpop.permute.xlu0 %984
          %v987 = vmax.f32 %v969, %v985
          %v988 = vsub.f32 %v981, %v987
          %v989 = vmax.f32 %v988, 0.0
          %v990 = vsub.f32 %v973, %v969
          %v991 = vsub.f32 %v975, %v974
          %993 = vset.pattern.permute.xlu0 0
          %994 = vperm.xlu0 %993, %v991
          %v995 = vpop.permute.xlu0 %994
          %v997 = vadd.f32 %v990, %v995
          %v998 = vsub.f32 %v997, %v989
          %v999 = vmax.f32 %v998, 1e-06
          %v1000 = vrcp.pop %v999
          %v1001 = vmul.f32 %v989, %v1000
          %vm1002 = vcmp.gt.f32.partialorder %v1001, 0.5
          %v1003 = vsel %vm1002, 1, 0
          %v1004 = vcvt.s32.f32 %v1003
          %v1005 = vld [vmem:[%s10] sm:$0x3]
          %v1006 = vlog2.pop %v1005
          %v1007 = vmul.f32 %v1006, 0.6931472
          %v1008 = vmax.f32 %v1007, -100.0
          %v1009 = vsub.f32 1.0, %v1005
          %v1010 = vlog2.pop %v1009
          %v1011 = vmul.f32 %v1010, 0.6931472
          %v1012 = vmax.f32 %v1011, -100.0
          %v1013 = vmul.f32 %v1001, %v1008
          %v1014 = vsub.f32 1.0, %v1001
          %v1015 = vmul.f32 %v1014, %v1012
          %v1016 = vadd.f32 %v1013, %v1015
          %v1017 = vsub.f32 0.0, %v1016
          %v1018 = vmul.f32 %v1017, %v1004
          %v1019 = vsel %vm932, %v1018, 0.0
          %1020 = vadd.xlane.f32.xlu0 %v1019
          %v1021 = vpop.xlane.xlu0 %1020
          %v1022 = vrot.slane %v1021, 4
          %v1023 = vadd.f32 %v1021, %v1022
          %v1024 = vrot.slane %v1023, 2
          %v1025 = vadd.f32 %v1023, %v1024
          %v1026 = vrot.slane %v1025, 1
          %v1027 = vadd.f32 %v1025, %v1026
          %s1028 = vtos %v1027
          %v1029 = vsel %vm932, %v1004, 0.0
          %1030 = vadd.xlane.f32.xlu0 %v1029
          %v1031 = vpop.xlane.xlu0 %1030
          %v1032 = vrot.slane %v1031, 4
          %v1033 = vadd.f32 %v1031, %v1032
          %v1034 = vrot.slane %v1033, 2
          %v1035 = vadd.f32 %v1033, %v1034
          %v1036 = vrot.slane %v1035, 1
          %v1037 = vadd.f32 %v1035, %v1036
          %s1038 = vtos %v1037
          %s1039 = smul.f32 %s776, 0.001953125
          %s1040 = scalar_lea.smem [#allocation11], 0
          %1041 = sst [smem:[%s1040]] %s1039
          %s1042 = smul.f32 %s843, 0.0009765625
          %s1043 = scalar_lea.smem [#allocation11], 1
          %1044 = sst [smem:[%s1043]] %s1042
          %s1045 = smul.f32 %s886, 0.001953125
          %s1046 = scalar_lea.smem [#allocation11], 2
          %1047 = sst [smem:[%s1046]] %s1045
          %s1048 = smul.f32 %s965, 0.0625
          %s1049 = scalar_lea.smem [#allocation11], 3
          %1050 = sst [smem:[%s1049]] %s1048
          %s1051 = smul.f32 %s942, 0.03125
          %s1052 = scalar_lea.smem [#allocation11], 4
          %1053 = sst [smem:[%s1052]] %s1051
          %p1054 = scmp.gt.f32.partialorder %s1038, 0.0
          %s1055 = smax.f32 %s1038, 1.0
          %v1056 = vstv %s1055
          %v1057 = vrcp.pop %v1056
          %s1058 = vtos %v1057
          %s1059 = smul.f32 %s1028, %s1058
          %s1060 = scalar_select %p1054, %s1059, 0.0
          %s1061 = scalar_lea.smem [#allocation11], 5
          %1062 = sst [smem:[%s1061]] %s1060
        $region80: #{tpu_custom_call.1} parent=63 // pred_fallthru
          _
        // Predicated region
        $region81: #{tpu_custom_call.1} parent=63 // pred_check
          %p1063 = pneg %p284
        $region82: #{tpu_custom_call.1} parent=63 // pred_check_branch
          %1065 = sbr.rel (%p1063) target = $region84
        $region83: #{tpu_custom_call.1} parent=63 // pred_region
          %s1067 = ssub.s32 64, 64
          %1068 = vsyncadd [#allocation6], %s1067
          %s1070 = sshll.u32 [#allocation10], 4
          %s1071 = int_to_ptr.vmem [resolvable:$true] %s1070
          %1073 = dma.vmem_to_hbm [thread:$0]  %s1071, 64, %s11, [#allocation6]
        $region84: #{tpu_custom_call.1} parent=63 // pred_fallthru
          _
        // Predicated region
        $region85: #{tpu_custom_call.1} parent=63 // pred_check
          %p1074 = pneg %p305
        $region86: #{tpu_custom_call.1} parent=63 // pred_check_branch
          %1076 = sbr.rel (%p1074) target = $region88
        $region87: #{tpu_custom_call.1} parent=63 // pred_region
          %s1078 = ssub.s32 16, 16
          %1079 = vsyncadd [#allocation7], %s1078
          %1082 = dma.smem_to_hbm [#allocation11], 16, %s12, [#allocation7]
        $region88: #{tpu_custom_call.1} parent=63 // pred_fallthru
          _
        // Predicated region
        $region89: #{tpu_custom_call.1} parent=63 // pred_check
          %p1083 = pneg %p284
        $region90: #{tpu_custom_call.1} parent=63 // pred_check_branch
          %1085 = sbr.rel (%p1083) target = $region92
        $region91: #{tpu_custom_call.1} parent=63 // pred_region
          %1086 = dma.done [#allocation6], 64
        $region92: #{tpu_custom_call.1} parent=63 // pred_fallthru
          _
        // Predicated region
        $region93: #{tpu_custom_call.1} parent=63 // pred_check
          %p1087 = pneg %p305
        $region94: #{tpu_custom_call.1} parent=63 // pred_check_branch
          %1089 = sbr.rel (%p1087) target = $region96
        $region95: #{tpu_custom_call.1} parent=63 // pred_region
          %1090 = dma.done [#allocation7], 16
        $region96: #{tpu_custom_call.1} parent=63 // pred_fallthru
          _
        %1091 = sfence
      $region64: #{tpu_custom_call.1} parent=5 // pred_fallthru
        _
      %p1092 = scmp.le.s32.totalorder 2, %s25
      // Predicated region
      $region97: #{tpu_custom_call.1} parent=5 // pred_check
        %p1093 = pneg %p1092
      $region98: #{tpu_custom_call.1} parent=5 // pred_check_branch
        %1095 = sbr.rel (%p1093) target = $region100
      $region99: #{tpu_custom_call.1} parent=5 // pred_region
        %s1096 = ssub.s32 %s25, 2
      $region100: #{tpu_custom_call.1} parent=5 // pred_fallthru
        _
    $region6: #{tpu_custom_call.1} parent=1 // loop_footer
      %s29 = sadd.s32 1, %s25
    $region7: #{tpu_custom_call.1} parent=1 // loop_footer_branch
      %24 = sbr.rel target = $region3
    $region8: #{tpu_custom_call.1} parent=1 // loop_exit
      _
    %1097 = vsyncpa [#allocation5], 1
    %s1098 = scalar_lea.sflag [#allocation5], 1
    %1099 = vsyncpa %s1098, 1
    %1100 = vsyncpa [#allocation9], 1
    %s1101 = scalar_lea.sflag [#allocation9], 1
    %1102 = vsyncpa %s1101, 1
    %1103 = vsyncpa [#allocation6], 1
    %s1104 = scalar_lea.sflag [#allocation6], 1
    %1105 = vsyncpa %s1104, 1
    %1106 = vsyncpa [#allocation7], 1
    %s1107 = scalar_lea.sflag [#allocation7], 1
    %1108 = vsyncpa %s1107, 1

</llo_original>
